<compile_context>
chip_gen: v7x
topology: tpu7x:2x2x1
jax: 0.10.0
libtpu: 0.0.40
codegen_flags: <defaults>
</compile_context>

<pallas_src>
import jax
import jax.numpy as jnp
from jax.experimental import pallas as pl
from jax.experimental.pallas import tpu as pltpu


def make_cnn_text_kernel(widths, filters):
    """Kernel closure over the static width list and filter count."""
    n_w = len(widths)

    def kernel(x_ref, *wb_refs_and_out):
        # x_ref : (TB, S, H)
        # then, per width w: w_ref (H, w*Co), b_ref (1, Co)
        # o_ref : (TB, n_w * Co)
        o_ref = wb_refs_and_out[-1]
        wb_refs = wb_refs_and_out[:-1]

        x = x_ref[...]                       # (TB, S, H) float32
        TB, S, H = x.shape
        x2d = x.reshape(TB * S, H)           # M = TB*S rows for the MXU

        for idx, width in enumerate(widths):
            w_ref = wb_refs[2 * idx]         # (H, width*Co)
            b_ref = wb_refs[2 * idx + 1]     # (1, Co)
            Co = filters
            L = S - width + 1                # valid conv positions

            # One matmul per width: all taps packed along N.
            y = jnp.dot(x2d, w_ref[...],
                        preferred_element_type=jnp.float32)   # (TB*S, width*Co)
            y = y.reshape(TB, S, width * Co)

            # conv[b, t, co] = sum_dt y[b, t+dt, dt*Co + co]
            conv = jnp.zeros((TB, L, Co), jnp.float32)
            for dt in range(width):          # static, unrolled (<=5 taps)
                conv = conv + y[:, dt:dt + L, dt * Co:(dt + 1) * Co]

            conv = conv + b_ref[...].reshape(1, 1, Co)
            act = jnp.maximum(conv, 0.0)     # ReLU
            pooled = jnp.max(act, axis=1)    # max over time -> (TB, Co)

            # Lane-aligned (multiple-of-128) column slab of the output.
            o_ref[:, idx * Co:(idx + 1) * Co] = pooled.astype(o_ref.dtype)

    return kernel


def cnn_text_forward(x, weights, biases, *, widths=(3, 4, 5), block_b=8):
    """x: (B, S, H) f32; weights[i]: (Co, widths[i], H); biases[i]: (Co,).

    Returns (B, len(widths) * Co), matching CNN_Text.forward.
    """
    B, S, H = x.shape
    Co = int(biases[0].shape[-1])
    n_w = len(widths)

    TB = min(block_b, B)
    assert B % TB == 0, "example keeps B a multiple of the batch tile"
    grid = (B // TB,)

    # Repack each conv weight (Co, w, H) -> (H, w*Co): taps along MXU N dim.
    ops = [x]
    in_specs = [pl.BlockSpec((TB, S, H), lambda i: (i, 0, 0))]
    for W, b, wd in zip(weights, biases, widths):
        w_cat = jnp.transpose(W, (2, 1, 0)).reshape(H, wd * Co)   # (H, w*Co)
        ops.append(w_cat)
        in_specs.append(pl.BlockSpec((H, wd * Co), lambda i: (0, 0)))
        ops.append(b.reshape(1, Co))
        in_specs.append(pl.BlockSpec((1, Co), lambda i: (0, 0)))

    out = pl.pallas_call(
        make_cnn_text_kernel(widths, Co),
        out_shape=jax.ShapeDtypeStruct((B, n_w * Co), x.dtype),
        grid_spec=pltpu.PrefetchScalarGridSpec(
            num_scalar_prefetch=0,
            grid=grid,
            in_specs=in_specs,
            out_specs=pl.BlockSpec((TB, n_w * Co), lambda i: (i, 0)),
        ),
        compiler_params=pltpu.CompilerParams(
            dimension_semantics=("parallel",),
        ),
    )(*ops)
    return out


def cnn_text_ref(x, weights, biases, widths):
    """Pure-JAX reference with plain conv-as-einsum semantics."""
    B, S, H = x.shape
    outs = []
    for W, b, wd in zip(weights, biases, widths):
        L = S - wd + 1
        patches = jnp.stack([x[:, dt:dt + L, :] for dt in range(wd)], axis=2)
        conv = jnp.einsum("bldh,cdh->blc", patches, W) + b[None, None, :]
        outs.append(jnp.max(jax.nn.relu(conv), axis=1))
    return jnp.concatenate(outs, axis=1)


if __name__ == "__main__":
    # Small config consistent with the module: batch=16, seq=16, n_in=32,
    # widths=[3,4,5], filters=128 (lane-dense output columns).
    B, S, H = 16, 16, 32
    widths = (3, 4, 5)
    Co = 128

    key = jax.random.PRNGKey(0)
    kx, *kws = jax.random.split(key, 1 + 2 * len(widths))
    x = jax.random.normal(kx, (B, S, H), jnp.float32)

    weights, biases = [], []
    for i, wd in enumerate(widths):
        kw, kb = kws[2 * i], kws[2 * i + 1]
        # PyTorch Conv2d default init: U(-1/sqrt(fan_in), 1/sqrt(fan_in)).
        bound = float(1.0 / (1 * wd * H) ** 0.5)
        weights.append(
            jax.random.uniform(kw, (Co, wd, H), jnp.float32, -bound, bound))
        biases.append(
            jax.random.uniform(kb, (Co,), jnp.float32, -bound, bound))

    out = cnn_text_forward(x, weights, biases, widths=widths, block_b=8)
    out = jax.block_until_ready(out)

    ref = cnn_text_ref(x, weights, biases, widths)
    assert out.shape == (B, len(widths) * Co)
    # Tolerance covers MXU reduced-precision f32 matmul vs XLA einsum.
    assert jnp.allclose(out, ref, atol=1e-2, rtol=1e-2), "mismatch vs reference"

    print("KERNEL_OK")
</pallas_src>

<mosaic_0001>
module attributes {stable_mosaic.version = 11 : i64} {
  func.func @kernel(%arg0: i32, %arg1: memref<8x16x32xf32, #tpu.memory_space<vmem>>, %arg2: memref<32x384xf32, #tpu.memory_space<vmem>>, %arg3: memref<1x128xf32, #tpu.memory_space<vmem>>, %arg4: memref<32x512xf32, #tpu.memory_space<vmem>>, %arg5: memref<1x128xf32, #tpu.memory_space<vmem>>, %arg6: memref<32x640xf32, #tpu.memory_space<vmem>>, %arg7: memref<1x128xf32, #tpu.memory_space<vmem>>, %arg8: memref<8x384xf32, #tpu.memory_space<vmem>>) attributes {dimension_semantics = [#tpu.dimension_semantics<parallel>], iteration_bounds = array<i64: 2>, scalar_prefetch = 0 : i64, scratch_operands = 0 : i64, tpu.core_type = #tpu.core_type<tc>, window_params = [{transform_indices = @transform_0, window_bounds = array<i64: 8, 16, 32>}, {pipeline_mode = #tpu.pipeline_mode<synchronous>, transform_indices = @transform_1, window_bounds = array<i64: 32, 384>}, {pipeline_mode = #tpu.pipeline_mode<synchronous>, transform_indices = @transform_2, window_bounds = array<i64: 1, 128>}, {pipeline_mode = #tpu.pipeline_mode<synchronous>, transform_indices = @transform_3, window_bounds = array<i64: 32, 512>}, {pipeline_mode = #tpu.pipeline_mode<synchronous>, transform_indices = @transform_4, window_bounds = array<i64: 1, 128>}, {pipeline_mode = #tpu.pipeline_mode<synchronous>, transform_indices = @transform_5, window_bounds = array<i64: 32, 640>}, {pipeline_mode = #tpu.pipeline_mode<synchronous>, transform_indices = @transform_6, window_bounds = array<i64: 1, 128>}, {transform_indices = @transform_7, window_bounds = array<i64: 8, 384>}]} {
    %c0 = arith.constant 0 : index
    %c0_0 = arith.constant 0 : index
    %c0_1 = arith.constant 0 : index
    %0 = vector.load %arg1[%c0, %c0_0, %c0_1] : memref<8x16x32xf32, #tpu.memory_space<vmem>>, vector<8x16x32xf32>
    %1 = vector.shape_cast %0 : vector<8x16x32xf32> to vector<128x32xf32>
    %c0_2 = arith.constant 0 : index
    %c0_3 = arith.constant 0 : index
    %2 = vector.load %arg2[%c0_2, %c0_3] : memref<32x384xf32, #tpu.memory_space<vmem>>, vector<32x384xf32>
    %cst = arith.constant dense<0.000000e+00> : vector<128x384xf32>
    %3 = tpu.matmul %1, %2, %cst {dimension_numbers = #tpu.dot_dimension_numbers<[1], [0], [0], [1], [0, 0, 1, 1], [], []>} : vector<128x32xf32>, vector<32x384xf32>, vector<128x384xf32> -> vector<128x384xf32>
    %4 = vector.shape_cast %3 : vector<128x384xf32> to vector<8x16x384xf32>
    %cst_4 = arith.constant 0.000000e+00 : f32
    %5 = vector.broadcast %cst_4 : f32 to vector<8x14x128xf32>
    %6 = vector.extract_strided_slice %4 {offsets = [0, 0, 0], sizes = [8, 14, 128], strides = [1, 1, 1]} : vector<8x16x384xf32> to vector<8x14x128xf32>
    %7 = arith.addf %5, %6 : vector<8x14x128xf32>
    %8 = vector.extract_strided_slice %4 {offsets = [0, 1, 128], sizes = [8, 14, 128], strides = [1, 1, 1]} : vector<8x16x384xf32> to vector<8x14x128xf32>
    %9 = arith.addf %7, %8 : vector<8x14x128xf32>
    %10 = vector.extract_strided_slice %4 {offsets = [0, 2, 256], sizes = [8, 14, 128], strides = [1, 1, 1]} : vector<8x16x384xf32> to vector<8x14x128xf32>
    %11 = arith.addf %9, %10 : vector<8x14x128xf32>
    %c0_5 = arith.constant 0 : index
    %c0_6 = arith.constant 0 : index
    %12 = vector.load %arg3[%c0_5, %c0_6] : memref<1x128xf32, #tpu.memory_space<vmem>>, vector<1x128xf32>
    %13 = vector.shape_cast %12 : vector<1x128xf32> to vector<1x1x128xf32>
    %14 = vector.broadcast %13 : vector<1x1x128xf32> to vector<8x14x128xf32>
    %15 = arith.addf %11, %14 : vector<8x14x128xf32>
    %cst_7 = arith.constant 0.000000e+00 : f32
    %16 = vector.broadcast %cst_7 : f32 to vector<8x14x128xf32>
    %17 = arith.maximumf %15, %16 : vector<8x14x128xf32>
    %cst_8 = arith.constant dense<0xFF800000> : vector<8x128xf32>
    %18 = vector.multi_reduction <maximumf>, %17, %cst_8 [1] : vector<8x14x128xf32> to vector<8x128xf32>
    %c0_9 = arith.constant 0 : index
    %c0_10 = arith.constant 0 : index
    %19 = vector.load %arg8[%c0_9, %c0_10] : memref<8x384xf32, #tpu.memory_space<vmem>>, vector<8x128xf32>
    tpu.vector_store %arg8[%c0_9, %c0_10], %18 {strides = array<i32>} : memref<8x384xf32, #tpu.memory_space<vmem>>, vector<8x128xf32>,
    %c0_11 = arith.constant 0 : index
    %c0_12 = arith.constant 0 : index
    %20 = vector.load %arg4[%c0_11, %c0_12] : memref<32x512xf32, #tpu.memory_space<vmem>>, vector<32x512xf32>
    %cst_13 = arith.constant dense<0.000000e+00> : vector<128x512xf32>
    %21 = tpu.matmul %1, %20, %cst_13 {dimension_numbers = #tpu.dot_dimension_numbers<[1], [0], [0], [1], [0, 0, 1, 1], [], []>} : vector<128x32xf32>, vector<32x512xf32>, vector<128x512xf32> -> vector<128x512xf32>
    %22 = vector.shape_cast %21 : vector<128x512xf32> to vector<8x16x512xf32>
    %cst_14 = arith.constant 0.000000e+00 : f32
    %23 = vector.broadcast %cst_14 : f32 to vector<8x13x128xf32>
    %24 = vector.extract_strided_slice %22 {offsets = [0, 0, 0], sizes = [8, 13, 128], strides = [1, 1, 1]} : vector<8x16x512xf32> to vector<8x13x128xf32>
    %25 = arith.addf %23, %24 : vector<8x13x128xf32>
    %26 = vector.extract_strided_slice %22 {offsets = [0, 1, 128], sizes = [8, 13, 128], strides = [1, 1, 1]} : vector<8x16x512xf32> to vector<8x13x128xf32>
    %27 = arith.addf %25, %26 : vector<8x13x128xf32>
    %28 = vector.extract_strided_slice %22 {offsets = [0, 2, 256], sizes = [8, 13, 128], strides = [1, 1, 1]} : vector<8x16x512xf32> to vector<8x13x128xf32>
    %29 = arith.addf %27, %28 : vector<8x13x128xf32>
    %30 = vector.extract_strided_slice %22 {offsets = [0, 3, 384], sizes = [8, 13, 128], strides = [1, 1, 1]} : vector<8x16x512xf32> to vector<8x13x128xf32>
    %31 = arith.addf %29, %30 : vector<8x13x128xf32>
    %c0_15 = arith.constant 0 : index
    %c0_16 = arith.constant 0 : index
    %32 = vector.load %arg5[%c0_15, %c0_16] : memref<1x128xf32, #tpu.memory_space<vmem>>, vector<1x128xf32>
    %33 = vector.shape_cast %32 : vector<1x128xf32> to vector<1x1x128xf32>
    %34 = vector.broadcast %33 : vector<1x1x128xf32> to vector<8x13x128xf32>
    %35 = arith.addf %31, %34 : vector<8x13x128xf32>
    %cst_17 = arith.constant 0.000000e+00 : f32
    %36 = vector.broadcast %cst_17 : f32 to vector<8x13x128xf32>
    %37 = arith.maximumf %35, %36 : vector<8x13x128xf32>
    %cst_18 = arith.constant dense<0xFF800000> : vector<8x128xf32>
    %38 = vector.multi_reduction <maximumf>, %37, %cst_18 [1] : vector<8x13x128xf32> to vector<8x128xf32>
    %c0_19 = arith.constant 0 : index
    %c128 = arith.constant 128 : index
    %39 = vector.load %arg8[%c0_19, %c128] : memref<8x384xf32, #tpu.memory_space<vmem>>, vector<8x128xf32>
    tpu.vector_store %arg8[%c0_19, %c128], %38 {strides = array<i32>} : memref<8x384xf32, #tpu.memory_space<vmem>>, vector<8x128xf32>,
    %c0_20 = arith.constant 0 : index
    %c0_21 = arith.constant 0 : index
    %40 = vector.load %arg6[%c0_20, %c0_21] : memref<32x640xf32, #tpu.memory_space<vmem>>, vector<32x640xf32>
    %cst_22 = arith.constant dense<0.000000e+00> : vector<128x640xf32>
    %41 = tpu.matmul %1, %40, %cst_22 {dimension_numbers = #tpu.dot_dimension_numbers<[1], [0], [0], [1], [0, 0, 1, 1], [], []>} : vector<128x32xf32>, vector<32x640xf32>, vector<128x640xf32> -> vector<128x640xf32>
    %42 = vector.shape_cast %41 : vector<128x640xf32> to vector<8x16x640xf32>
    %cst_23 = arith.constant 0.000000e+00 : f32
    %43 = vector.broadcast %cst_23 : f32 to vector<8x12x128xf32>
    %44 = vector.extract_strided_slice %42 {offsets = [0, 0, 0], sizes = [8, 12, 128], strides = [1, 1, 1]} : vector<8x16x640xf32> to vector<8x12x128xf32>
    %45 = arith.addf %43, %44 : vector<8x12x128xf32>
    %46 = vector.extract_strided_slice %42 {offsets = [0, 1, 128], sizes = [8, 12, 128], strides = [1, 1, 1]} : vector<8x16x640xf32> to vector<8x12x128xf32>
    %47 = arith.addf %45, %46 : vector<8x12x128xf32>
    %48 = vector.extract_strided_slice %42 {offsets = [0, 2, 256], sizes = [8, 12, 128], strides = [1, 1, 1]} : vector<8x16x640xf32> to vector<8x12x128xf32>
    %49 = arith.addf %47, %48 : vector<8x12x128xf32>
    %50 = vector.extract_strided_slice %42 {offsets = [0, 3, 384], sizes = [8, 12, 128], strides = [1, 1, 1]} : vector<8x16x640xf32> to vector<8x12x128xf32>
    %51 = arith.addf %49, %50 : vector<8x12x128xf32>
    %52 = vector.extract_strided_slice %42 {offsets = [0, 4, 512], sizes = [8, 12, 128], strides = [1, 1, 1]} : vector<8x16x640xf32> to vector<8x12x128xf32>
    %53 = arith.addf %51, %52 : vector<8x12x128xf32>
    %c0_24 = arith.constant 0 : index
    %c0_25 = arith.constant 0 : index
    %54 = vector.load %arg7[%c0_24, %c0_25] : memref<1x128xf32, #tpu.memory_space<vmem>>, vector<1x128xf32>
    %55 = vector.shape_cast %54 : vector<1x128xf32> to vector<1x1x128xf32>
    %56 = vector.broadcast %55 : vector<1x1x128xf32> to vector<8x12x128xf32>
    %57 = arith.addf %53, %56 : vector<8x12x128xf32>
    %cst_26 = arith.constant 0.000000e+00 : f32
    %58 = vector.broadcast %cst_26 : f32 to vector<8x12x128xf32>
    %59 = arith.maximumf %57, %58 : vector<8x12x128xf32>
    %cst_27 = arith.constant dense<0xFF800000> : vector<8x128xf32>
    %60 = vector.multi_reduction <maximumf>, %59, %cst_27 [1] : vector<8x12x128xf32> to vector<8x128xf32>
    %c0_28 = arith.constant 0 : index
    %c256 = arith.constant 256 : index
    %61 = vector.load %arg8[%c0_28, %c256] : memref<8x384xf32, #tpu.memory_space<vmem>>, vector<8x128xf32>
    tpu.vector_store %arg8[%c0_28, %c256], %60 {strides = array<i32>} : memref<8x384xf32, #tpu.memory_space<vmem>>, vector<8x128xf32>,
    return
  }
  func.func @transform_0(%arg0: i32) -> (i32, i32, i32) {
    %c0_i32 = arith.constant 0 : i32
    %c0_i32_0 = arith.constant 0 : i32
    %c0_i32_1 = arith.constant 0 : i32
    return %arg0, %c0_i32, %c0_i32_0 : i32, i32, i32
  }
  func.func @transform_1(%arg0: i32) -> (i32, i32) {
    %c0_i32 = arith.constant 0 : i32
    %c0_i32_0 = arith.constant 0 : i32
    %c0_i32_1 = arith.constant 0 : i32
    return %c0_i32, %c0_i32_0 : i32, i32
  }
  func.func @transform_2(%arg0: i32) -> (i32, i32) {
    %c0_i32 = arith.constant 0 : i32
    %c0_i32_0 = arith.constant 0 : i32
    %c0_i32_1 = arith.constant 0 : i32
    return %c0_i32, %c0_i32_0 : i32, i32
  }
  func.func @transform_3(%arg0: i32) -> (i32, i32) {
    %c0_i32 = arith.constant 0 : i32
    %c0_i32_0 = arith.constant 0 : i32
    %c0_i32_1 = arith.constant 0 : i32
    return %c0_i32, %c0_i32_0 : i32, i32
  }
  func.func @transform_4(%arg0: i32) -> (i32, i32) {
    %c0_i32 = arith.constant 0 : i32
    %c0_i32_0 = arith.constant 0 : i32
    %c0_i32_1 = arith.constant 0 : i32
    return %c0_i32, %c0_i32_0 : i32, i32
  }
  func.func @transform_5(%arg0: i32) -> (i32, i32) {
    %c0_i32 = arith.constant 0 : i32
    %c0_i32_0 = arith.constant 0 : i32
    %c0_i32_1 = arith.constant 0 : i32
    return %c0_i32, %c0_i32_0 : i32, i32
  }
  func.func @transform_6(%arg0: i32) -> (i32, i32) {
    %c0_i32 = arith.constant 0 : i32
    %c0_i32_0 = arith.constant 0 : i32
    %c0_i32_1 = arith.constant 0 : i32
    return %c0_i32, %c0_i32_0 : i32, i32
  }
  func.func @transform_7(%arg0: i32) -> (i32, i32) {
    %c0_i32 = arith.constant 0 : i32
    %c0_i32_0 = arith.constant 0 : i32
    return %arg0, %c0_i32 : i32, i32
  }
}

</mosaic_0001>

<llo_original>
// kernel: tpu_custom_call.1
$region0: #{tpu_custom_call.1}
  #allocation0 [shape = 'u32[]', space=smem, size = 0x4, offset = 0x4, fixed_abs, tag = 'smem constant byte address 0x4 - core index']
  #allocation1 [shape = 'u32[144,128]{1,0:T(1,128)}', space=vmem, size = 0x12000, scoped, tag = 'internal scratch']
  %s0 = inlined_call_operand.hbm [shape: f32[16,16,32], index: 0, kind: input, shape index: {}]
  %s1 = inlined_call_operand.hbm [shape: f32[32,384], index: 1, kind: input, shape index: {}]
  %s2 = inlined_call_operand.vmem [shape: f32[1,128], index: 2, kind: input, shape index: {}]
  %s3 = inlined_call_operand.hbm [shape: f32[32,512], index: 3, kind: input, shape index: {}]
  %s4 = inlined_call_operand.vmem [shape: f32[1,128], index: 4, kind: input, shape index: {}]
  %s5 = inlined_call_operand.hbm [shape: f32[32,640], index: 5, kind: input, shape index: {}]
  %s6 = inlined_call_operand.vmem [shape: f32[1,128], index: 6, kind: input, shape index: {}]
  %s7 = inlined_call_operand.hbm [shape: f32[16,384], index: 7, kind: output, shape index: {}]
  %s8 = sld [smem:[#allocation0]]
  $region77: #{tpu_custom_call.1} parent=0
    _
  %s10 = ssub.s32 1, %s8
  %s11 = scalar_select 0, %s10, %s8
  $region1: #{tpu_custom_call.1} parent=0
    #allocation2 [shape = 'u8[131072]{0}', space=vmem, size = 0x20000, scoped, tag = 'input window, operand 0']
    #allocation3 [shape = 's32[2]{0}', space=sflag, size = 0x8, scoped, tag = 'scoped memory for tpu_custom_call.1']
    #allocation4 [shape = 's32[2]{0}', space=sflag, size = 0x8, scoped, tag = 'scoped memory for tpu_custom_call.1']
    #allocation5 [shape = 'u8[49152]{0}', space=vmem, size = 0xc000, scoped, tag = 'input window, operand 1, single buffered']
    #allocation6 [shape = 's32[1]{0}', space=sflag, size = 0x4, scoped, tag = 'scoped memory for tpu_custom_call.1']
    #allocation7 [shape = 'u8[65536]{0}', space=vmem, size = 0x10000, scoped, tag = 'input window, operand 3, single buffered']
    #allocation8 [shape = 'u8[81920]{0}', space=vmem, size = 0x14000, scoped, tag = 'input window, operand 5, single buffered']
    #allocation9 [shape = 's32[1]{0}', space=sflag, size = 0x4, scoped, tag = 'scoped memory for tpu_custom_call.1']
    #allocation10 [shape = 'u8[24576]{0}', space=vmem, size = 0x6000, scoped, tag = 'output window, operand 0']
    %12 = vsyncpa [#allocation3], 0
    %s13 = scalar_lea.sflag [#allocation3], 1
    %14 = vsyncpa %s13, 0
    %15 = vsyncpa [#allocation6], 0
    %16 = vsyncpa [#allocation9], 0
    %17 = vsyncpa [#allocation4], 0
    %s18 = scalar_lea.sflag [#allocation4], 1
    %19 = vsyncpa %s18, 0
    loop: start=0, step=1, limit=4
    $region2: #{tpu_custom_call.1} parent=1 // loop_pre_header
      _
    $region3: #{tpu_custom_call.1} parent=1 // loop_header
      %s21 = sphi 0, %s25
      %p22 = scmp.ge.s32.totalorder %s21, 4
      %s31 = sphi 0, %s33
      %s34 = sphi 0, %s31
      %s35 = sphi 0, %s34
      %s51 = sphi 0, %s35
      %s55 = sphi 0, %s55
      %s57 = sphi 0, %s55
      %s58 = sphi 0, %s57
      %s72 = sphi 0, %s58
      %s76 = sphi 0, %s76
      %s78 = sphi 0, %s76
      %s79 = sphi 0, %s78
      %s93 = sphi 0, %s79
      %s97 = sphi 0, %s97
      %s99 = sphi 0, %s97
      %s100 = sphi 0, %s99
      %s114 = sphi 0, %s100
      %s118 = sphi 0, %s118
      %s120 = sphi 0, %s118
      %s121 = sphi 0, %s120
      %s135 = sphi 0, %s121
      %s139 = sphi 0, %s139
      %s141 = sphi 0, %s139
      %s142 = sphi 0, %s141
      %s156 = sphi 0, %s142
      %s160 = sphi 0, %s160
      %s162 = sphi 0, %s160
      %s163 = sphi 0, %s162
      %s177 = sphi 0, %s163
      %s183 = sphi 0, %s185
      %s186 = sphi 0, %s183
      %s187 = sphi 0, %s186
      %s203 = sphi 0, %s187
    $region4: #{tpu_custom_call.1} parent=1 // loop_header_branch
      %24 = sbr.rel (%p22) target = $region8
    $region5: #{tpu_custom_call.1} parent=1 // loop_body
      %s26 = ssub.s32 %s21, 1
      %s27 = ssub.s32 %s21, 2
      %s28 = sadd.s32 %s21, 1
      %s29 = ssub.s32 %s21, %s28
      %p30 = scmp.eq.s32.totalorder %s29, 0
      %s32 = sadd.s32 %s31, 1
      %s33 = scalar_select %p30, %s31, %s32
      %p36 = pneg %p30
      %p37 = scmp.eq.s32.totalorder %s21, 1
      %p38 = por %p36, %p37
      %p39 = scmp.ne.s32.totalorder %s31, %s34
      %p40 = scmp.eq.s32.totalorder %s21, 0
      %p41 = por %p39, %p40
      %p42 = scmp.ne.s32.totalorder %s31, %s34
      %p43 = scmp.eq.s32.totalorder %s26, 1
      %p44 = por %p42, %p43
      %p45 = scmp.ne.s32.totalorder %s34, %s35
      %p46 = scmp.eq.s32.totalorder %s26, 0
      %p47 = por %p45, %p46
      %p48 = scmp.ne.s32.totalorder %s34, %s35
      %p49 = scmp.eq.s32.totalorder %s27, 1
      %p50 = por %p48, %p49
      %p52 = scmp.ne.s32.totalorder %s35, %s51
      %p53 = scmp.eq.s32.totalorder %s27, 0
      %p54 = por %p52, %p53
      %s56 = sadd.s32 %s55, 1
      %p59 = scmp.eq.s32.totalorder %s21, 1
      %p60 = scmp.ne.s32.totalorder %s55, %s57
      %p61 = scmp.eq.s32.totalorder %s21, 0
      %p62 = por %p60, %p61
      %p63 = scmp.ne.s32.totalorder %s55, %s57
      %p64 = scmp.eq.s32.totalorder %s26, 1
      %p65 = por %p63, %p64
      %p66 = scmp.ne.s32.totalorder %s57, %s58
      %p67 = scmp.eq.s32.totalorder %s26, 0
      %p68 = por %p66, %p67
      %p69 = scmp.ne.s32.totalorder %s57, %s58
      %p70 = scmp.eq.s32.totalorder %s27, 1
      %p71 = por %p69, %p70
      %p73 = scmp.ne.s32.totalorder %s58, %s72
      %p74 = scmp.eq.s32.totalorder %s27, 0
      %p75 = por %p73, %p74
      %s77 = sadd.s32 %s76, 1
      %p80 = scmp.eq.s32.totalorder %s21, 1
      %p81 = scmp.ne.s32.totalorder %s76, %s78
      %p82 = scmp.eq.s32.totalorder %s21, 0
      %p83 = por %p81, %p82
      %p84 = scmp.ne.s32.totalorder %s76, %s78
      %p85 = scmp.eq.s32.totalorder %s26, 1
      %p86 = por %p84, %p85
      %p87 = scmp.ne.s32.totalorder %s78, %s79
      %p88 = scmp.eq.s32.totalorder %s26, 0
      %p89 = por %p87, %p88
      %p90 = scmp.ne.s32.totalorder %s78, %s79
      %p91 = scmp.eq.s32.totalorder %s27, 1
      %p92 = por %p90, %p91
      %p94 = scmp.ne.s32.totalorder %s79, %s93
      %p95 = scmp.eq.s32.totalorder %s27, 0
      %p96 = por %p94, %p95
      %s98 = sadd.s32 %s97, 1
      %p101 = scmp.eq.s32.totalorder %s21, 1
      %p102 = scmp.ne.s32.totalorder %s97, %s99
      %p103 = scmp.eq.s32.totalorder %s21, 0
      %p104 = por %p102, %p103
      %p105 = scmp.ne.s32.totalorder %s97, %s99
      %p106 = scmp.eq.s32.totalorder %s26, 1
      %p107 = por %p105, %p106
      %p108 = scmp.ne.s32.totalorder %s99, %s100
      %p109 = scmp.eq.s32.totalorder %s26, 0
      %p110 = por %p108, %p109
      %p111 = scmp.ne.s32.totalorder %s99, %s100
      %p112 = scmp.eq.s32.totalorder %s27, 1
      %p113 = por %p111, %p112
      %p115 = scmp.ne.s32.totalorder %s100, %s114
      %p116 = scmp.eq.s32.totalorder %s27, 0
      %p117 = por %p115, %p116
      %s119 = sadd.s32 %s118, 1
      %p122 = scmp.eq.s32.totalorder %s21, 1
      %p123 = scmp.ne.s32.totalorder %s118, %s120
      %p124 = scmp.eq.s32.totalorder %s21, 0
      %p125 = por %p123, %p124
      %p126 = scmp.ne.s32.totalorder %s118, %s120
      %p127 = scmp.eq.s32.totalorder %s26, 1
      %p128 = por %p126, %p127
      %p129 = scmp.ne.s32.totalorder %s120, %s121
      %p130 = scmp.eq.s32.totalorder %s26, 0
      %p131 = por %p129, %p130
      %p132 = scmp.ne.s32.totalorder %s120, %s121
      %p133 = scmp.eq.s32.totalorder %s27, 1
      %p134 = por %p132, %p133
      %p136 = scmp.ne.s32.totalorder %s121, %s135
      %p137 = scmp.eq.s32.totalorder %s27, 0
      %p138 = por %p136, %p137
      %s140 = sadd.s32 %s139, 1
      %p143 = scmp.eq.s32.totalorder %s21, 1
      %p144 = scmp.ne.s32.totalorder %s139, %s141
      %p145 = scmp.eq.s32.totalorder %s21, 0
      %p146 = por %p144, %p145
      %p147 = scmp.ne.s32.totalorder %s139, %s141
      %p148 = scmp.eq.s32.totalorder %s26, 1
      %p149 = por %p147, %p148
      %p150 = scmp.ne.s32.totalorder %s141, %s142
      %p151 = scmp.eq.s32.totalorder %s26, 0
      %p152 = por %p150, %p151
      %p153 = scmp.ne.s32.totalorder %s141, %s142
      %p154 = scmp.eq.s32.totalorder %s27, 1
      %p155 = por %p153, %p154
      %p157 = scmp.ne.s32.totalorder %s142, %s156
      %p158 = scmp.eq.s32.totalorder %s27, 0
      %p159 = por %p157, %p158
      %s161 = sadd.s32 %s160, 1
      %p164 = scmp.eq.s32.totalorder %s21, 1
      %p165 = scmp.ne.s32.totalorder %s160, %s162
      %p166 = scmp.eq.s32.totalorder %s21, 0
      %p167 = por %p165, %p166
      %p168 = scmp.ne.s32.totalorder %s160, %s162
      %p169 = scmp.eq.s32.totalorder %s26, 1
      %p170 = por %p168, %p169
      %p171 = scmp.ne.s32.totalorder %s162, %s163
      %p172 = scmp.eq.s32.totalorder %s26, 0
      %p173 = por %p171, %p172
      %p174 = scmp.ne.s32.totalorder %s162, %s163
      %p175 = scmp.eq.s32.totalorder %s27, 1
      %p176 = por %p174, %p175
      %p178 = scmp.ne.s32.totalorder %s163, %s177
      %p179 = scmp.eq.s32.totalorder %s27, 0
      %p180 = por %p178, %p179
      %s181 = ssub.s32 %s21, %s28
      %p182 = scmp.eq.s32.totalorder %s181, 0
      %s184 = sadd.s32 %s183, 1
      %s185 = scalar_select %p182, %s183, %s184
      %p188 = pneg %p182
      %p189 = scmp.eq.s32.totalorder %s21, 1
      %p190 = por %p188, %p189
      %p191 = scmp.ne.s32.totalorder %s183, %s186
      %p192 = scmp.eq.s32.totalorder %s21, 0
      %p193 = por %p191, %p192
      %p194 = scmp.ne.s32.totalorder %s183, %s186
      %p195 = scmp.eq.s32.totalorder %s26, 1
      %p196 = por %p194, %p195
      %p197 = scmp.ne.s32.totalorder %s186, %s187
      %p198 = scmp.eq.s32.totalorder %s26, 0
      %p199 = por %p197, %p198
      %p200 = scmp.ne.s32.totalorder %s186, %s187
      %p201 = scmp.eq.s32.totalorder %s27, 1
      %p202 = por %p200, %p201
      %p204 = scmp.ne.s32.totalorder %s187, %s203
      %p205 = scmp.eq.s32.totalorder %s27, 0
      %p206 = por %p204, %p205
      %p207 = scmp.le.s32.totalorder 1, %s21
      %p208 = scmp.lt.s32.totalorder %s21, 3
      %p209 = pnand %p207, %p208
      %p210 = pneg %p209
      // Predicated region
      $region9: #{tpu_custom_call.1} parent=5 // pred_check
        _
      $region10: #{tpu_custom_call.1} parent=5 // pred_check_branch
        %212 = sbr.rel (%p209) target = $region12
      $region11: #{tpu_custom_call.1} parent=5 // pred_region
        %s213 = ssub.s32 %s21, 1
        // Predicated region
        $region13: #{tpu_custom_call.1} parent=11 // pred_check
          %p214 = pneg %p68
        $region14: #{tpu_custom_call.1} parent=11 // pred_check_branch
          %216 = sbr.rel (%p214) target = $region16
        $region15: #{tpu_custom_call.1} parent=11 // pred_region
          %s218 = ssub.s32 1536, 1536
          %219 = vsyncadd [#allocation6], %s218
          %s220 = sshll.u32 [#allocation5], 4
          %s221 = int_to_ptr.vmem [resolvable:$true] %s220
          %226 = dma.hbm_to_vmem [thread:$0]  %s1, 1536, %s221, [#allocation6], 384, 384, 24
        $region16: #{tpu_custom_call.1} parent=11 // pred_fallthru
          _
        // Predicated region
        $region17: #{tpu_custom_call.1} parent=11 // pred_check
          %p227 = pneg %p89
        $region18: #{tpu_custom_call.1} parent=11 // pred_check_branch
          %229 = sbr.rel (%p227) target = $region20
        $region19: #{tpu_custom_call.1} parent=11 // pred_region
          _
        $region20: #{tpu_custom_call.1} parent=11 // pred_fallthru
          _
        // Predicated region
        $region21: #{tpu_custom_call.1} parent=11 // pred_check
          %p230 = pneg %p110
        $region22: #{tpu_custom_call.1} parent=11 // pred_check_branch
          %232 = sbr.rel (%p230) target = $region24
        $region23: #{tpu_custom_call.1} parent=11 // pred_region
          %s234 = ssub.s32 2048, 2048
          %235 = vsyncadd [#allocation6], %s234
          %s236 = sshll.u32 [#allocation7], 4
          %s237 = int_to_ptr.vmem [resolvable:$true] %s236
          %242 = dma.hbm_to_vmem [thread:$0]  %s3, 2048, %s237, [#allocation6], 512, 512, 32
        $region24: #{tpu_custom_call.1} parent=11 // pred_fallthru
          _
        // Predicated region
        $region25: #{tpu_custom_call.1} parent=11 // pred_check
          %p243 = pneg %p131
        $region26: #{tpu_custom_call.1} parent=11 // pred_check_branch
          %245 = sbr.rel (%p243) target = $region28
        $region27: #{tpu_custom_call.1} parent=11 // pred_region
          _
        $region28: #{tpu_custom_call.1} parent=11 // pred_fallthru
          _
        // Predicated region
        $region29: #{tpu_custom_call.1} parent=11 // pred_check
          %p246 = pneg %p152
        $region30: #{tpu_custom_call.1} parent=11 // pred_check_branch
          %248 = sbr.rel (%p246) target = $region32
        $region31: #{tpu_custom_call.1} parent=11 // pred_region
          %s250 = ssub.s32 2560, 2560
          %251 = vsyncadd [#allocation9], %s250
          %s252 = sshll.u32 [#allocation8], 4
          %s253 = int_to_ptr.vmem [resolvable:$true] %s252
          %258 = dma.hbm_to_vmem [thread:$0]  %s5, 2560, %s253, [#allocation9], 640, 640, 40
        $region32: #{tpu_custom_call.1} parent=11 // pred_fallthru
          _
        // Predicated region
        $region33: #{tpu_custom_call.1} parent=11 // pred_check
          %p259 = pneg %p173
        $region34: #{tpu_custom_call.1} parent=11 // pred_check_branch
          %261 = sbr.rel (%p259) target = $region36
        $region35: #{tpu_custom_call.1} parent=11 // pred_region
          _
        $region36: #{tpu_custom_call.1} parent=11 // pred_fallthru
          _
      $region12: #{tpu_custom_call.1} parent=5 // pred_fallthru
        _
      %p262 = scmp.lt.s32.totalorder %s21, 2
      // Predicated region
      $region37: #{tpu_custom_call.1} parent=5 // pred_check
        %p263 = pneg %p262
      $region38: #{tpu_custom_call.1} parent=5 // pred_check_branch
        %265 = sbr.rel (%p263) target = $region40
      $region39: #{tpu_custom_call.1} parent=5 // pred_region
        // Predicated region
        $region41: #{tpu_custom_call.1} parent=39 // pred_check
          %p266 = pneg %p41
        $region42: #{tpu_custom_call.1} parent=39 // pred_check_branch
          %268 = sbr.rel (%p266) target = $region44
        $region43: #{tpu_custom_call.1} parent=39 // pred_region
          %s269 = sand.u32 %s31, 1
          %s270 = scalar_lea.sflag [#allocation3], %s269
          %s271 = sand.u32 %s31, 1
          %s272 = smul.addr %s271, 128
          %s273 = scalar_lea.vmem [#allocation2], %s272
          %s274 = smul.u32 8, %s21
          %s276 = ssub.s32 2048, 2048
          %277 = vsyncadd %s270, %s276
          %s278 = smul.addr %s274, 2
          %s279 = smul.addr %s278, 128
          %s280 = scalar_lea.hbm %s0, %s279
          %s281 = sshll.u32 %s273, 4
          %s282 = int_to_ptr.vmem [resolvable:$true] %s281
          %287 = dma.hbm_to_vmem [thread:$0]  %s280, 2048, %s282, %s270, 128, 128, 8
        $region44: #{tpu_custom_call.1} parent=39 // pred_fallthru
          _
      $region40: #{tpu_custom_call.1} parent=5 // pred_fallthru
        _
      %p288 = scmp.le.s32.totalorder 1, %s21
      %p289 = scmp.lt.s32.totalorder %s21, 3
      %p290 = pnand %p288, %p289
      %p291 = pneg %p290
      // Predicated region
      $region45: #{tpu_custom_call.1} parent=5 // pred_check
        _
      $region46: #{tpu_custom_call.1} parent=5 // pred_check_branch
        %293 = sbr.rel (%p290) target = $region48
      $region47: #{tpu_custom_call.1} parent=5 // pred_region
        %s294 = ssub.s32 %s21, 1
        %s295 = sand.u32 %s34, 1
        %s296 = scalar_lea.sflag [#allocation3], %s295
        %s297 = sand.u32 %s34, 1
        %s298 = smul.addr %s297, 128
        %s299 = scalar_lea.vmem [#allocation2], %s298
        // Predicated region
        $region49: #{tpu_custom_call.1} parent=47 // pred_check
          %p300 = pneg %p47
        $region50: #{tpu_custom_call.1} parent=47 // pred_check_branch
          %302 = sbr.rel (%p300) target = $region52
        $region51: #{tpu_custom_call.1} parent=47 // pred_region
          %303 = dma.done %s296, 2048
        $region52: #{tpu_custom_call.1} parent=47 // pred_fallthru
          _
        // Predicated region
        $region53: #{tpu_custom_call.1} parent=47 // pred_check
          %p304 = pneg %p68
        $region54: #{tpu_custom_call.1} parent=47 // pred_check_branch
          %306 = sbr.rel (%p304) target = $region56
        $region55: #{tpu_custom_call.1} parent=47 // pred_region
          %307 = dma.done [#allocation6], 1536
        $region56: #{tpu_custom_call.1} parent=47 // pred_fallthru
          _
        // Predicated region
        $region57: #{tpu_custom_call.1} parent=47 // pred_check
          %p308 = pneg %p110
        $region58: #{tpu_custom_call.1} parent=47 // pred_check_branch
          %310 = sbr.rel (%p308) target = $region60
        $region59: #{tpu_custom_call.1} parent=47 // pred_region
          %311 = dma.done [#allocation6], 2048
        $region60: #{tpu_custom_call.1} parent=47 // pred_fallthru
          _
        // Predicated region
        $region61: #{tpu_custom_call.1} parent=47 // pred_check
          %p312 = pneg %p152
        $region62: #{tpu_custom_call.1} parent=47 // pred_check_branch
          %314 = sbr.rel (%p312) target = $region64
        $region63: #{tpu_custom_call.1} parent=47 // pred_region
          %315 = dma.done [#allocation9], 2560
        $region64: #{tpu_custom_call.1} parent=47 // pred_fallthru
          _
        %s316 = sand.u32 %s34, 1
        %s317 = scalar_lea.sflag [#allocation3], %s316
        %s318 = sand.u32 %s34, 1
        %s319 = smul.addr %s318, 128
        %s320 = scalar_lea.vmem [#allocation2], %s319
        %p321 = pneg %p47
        %p322 = pneg %p44
        %p323 = pneg %p68
        %p324 = pneg %p65
        %p325 = pneg %p89
        %p326 = pneg %p86
        %p327 = pneg %p110
        %p328 = pneg %p107
        %p329 = pneg %p131
        %p330 = pneg %p128
        %p331 = pneg %p152
        %p332 = pneg %p149
        %p333 = pneg %p173
        %p334 = pneg %p170
        %p335 = pneg %p199
        %p336 = pneg %p196
        %s337 = sand.u32 %s186, 1
        %s338 = scalar_lea.sflag [#allocation4], %s337
        %s339 = sand.u32 %s186, 1
        %s340 = smul.addr %s339, 24
        %s341 = scalar_lea.vmem [#allocation10], %s340
        %s342 = smul.u32 8, %s26
        %v343 = vld [vmem:[%s299] sm:$0xff]
        %v344 = vld [vmem:[%s299 + $0x8] sm:$0xff]
        %v345 = vld [vmem:[%s299 + $0x10] sm:$0xff]
        %v346 = vld [vmem:[%s299 + $0x18] sm:$0xff]
        %v347 = vld [vmem:[%s299 + $0x20] sm:$0xff]
        %v348 = vld [vmem:[%s299 + $0x28] sm:$0xff]
        %v349 = vld [vmem:[%s299 + $0x30] sm:$0xff]
        %v350 = vld [vmem:[%s299 + $0x38] sm:$0xff]
        %v351 = vld [vmem:[%s299 + $0x40] sm:$0xff]
        %v352 = vld [vmem:[%s299 + $0x48] sm:$0xff]
        %v353 = vld [vmem:[%s299 + $0x50] sm:$0xff]
        %v354 = vld [vmem:[%s299 + $0x58] sm:$0xff]
        %v355 = vld [vmem:[%s299 + $0x60] sm:$0xff]
        %v356 = vld [vmem:[%s299 + $0x68] sm:$0xff]
        %v357 = vld [vmem:[%s299 + $0x70] sm:$0xff]
        %v358 = vld [vmem:[%s299 + $0x78] sm:$0xff]
        %v359 = vld [vmem:[#allocation5] sm:$0xff]
        %v360 = vld [vmem:[#allocation5 + $0x8] sm:$0xff]
        %v361 = vld [vmem:[#allocation5 + $0x10] sm:$0xff]
        %v362 = vld [vmem:[#allocation5 + $0x18] sm:$0xff]
        %v363 = vld [vmem:[#allocation5 + $0x20] sm:$0xff]
        %v364 = vld [vmem:[#allocation5 + $0x28] sm:$0xff]
        %v365 = vld [vmem:[#allocation5 + $0x30] sm:$0xff]
        %v366 = vld [vmem:[#allocation5 + $0x38] sm:$0xff]
        %v367 = vld [vmem:[#allocation5 + $0x40] sm:$0xff]
        %v368 = vld [vmem:[#allocation5 + $0x48] sm:$0xff]
        %v369 = vld [vmem:[#allocation5 + $0x50] sm:$0xff]
        %v370 = vld [vmem:[#allocation5 + $0x58] sm:$0xff]
        %vm371 = vcmask 261120
        %v373 = vsel %vm371, %v343, 0
        %v376 = vsel %vm371, %v344, 0
        %v379 = vsel %vm371, %v345, 0
        %v382 = vsel %vm371, %v346, 0
        %v385 = vsel %vm371, %v347, 0
        %v388 = vsel %vm371, %v348, 0
        %v391 = vsel %vm371, %v349, 0
        %v394 = vsel %vm371, %v350, 0
        %v397 = vsel %vm371, %v351, 0
        %v400 = vsel %vm371, %v352, 0
        %v403 = vsel %vm371, %v353, 0
        %v406 = vsel %vm371, %v354, 0
        %v409 = vsel %vm371, %v355, 0
        %v412 = vsel %vm371, %v356, 0
        %v415 = vsel %vm371, %v357, 0
        %v418 = vsel %vm371, %v358, 0
        %420 = vmatprep.subr.mxu0 %v360
        %421 = vmatpush1.msra.mxu0 %v359
        %422 = vmatprep.subr.mxu0 %v363
        %423 = vmatpush1.msra.mxu0 %v362
        %424 = vmatprep.subr.mxu0 %v366
        %425 = vmatpush1.msra.mxu0 %v365
        %426 = vmatprep.subr.mxu0 %v369
        %427 = vmatpush1.msra.mxu0 %v368
        %428 = vmatprep.subr.mxu0 0.0
        %429 = vmatpush1.msra.mxu0 0.0
        %430 = vmatprep.subr.mxu0 0.0
        %431 = vmatpush1.msra.mxu0 0.0
        %432 = vmatprep.subr.mxu0 0.0
        %433 = vmatpush1.msra.mxu0 0.0
        %434 = vmatprep.subr.mxu0 0.0
        %435 = vmatpush1.msra.mxu0 0.0
        %436 = vmatprep.subr.mxu0 0.0
        %437 = vmatpush1.msra.mxu0 0.0
        %438 = vmatprep.subr.mxu0 0.0
        %439 = vmatpush1.msra.mxu0 0.0
        %440 = vmatprep.subr.mxu0 0.0
        %441 = vmatpush1.msra.mxu0 0.0
        %442 = vmatprep.subr.mxu0 0.0
        %443 = vmatpush1.msra.mxu0 0.0
        %444 = vmatprep.subr.mxu0 0.0
        %445 = vmatpush1.msra.mxu0 0.0
        %446 = vmatprep.subr.mxu0 0.0
        %447 = vmatpush1.msra.mxu0 0.0
        %448 = vmatprep.subr.mxu0 0.0
        %449 = vmatpush1.msra.mxu0 0.0
        %450 = vmatprep.subr.mxu0 0.0
        %451 = vmatpush1.msra.mxu0 0.0
        %452 = vmatprep.subr.mxu0 0.0
        %453 = vmatpush1.msra.mxu0 0.0
        %454 = vmatprep.subr.mxu0 0.0
        %455 = vmatpush1.msra.mxu0 0.0
        %456 = vmatprep.subr.mxu0 0.0
        %457 = vmatpush1.msra.mxu0 0.0
        %458 = vmatprep.subr.mxu0 0.0
        %459 = vmatpush1.msra.mxu0 0.0
        %460 = vmatprep.subr.mxu0 0.0
        %461 = vmatpush1.msra.mxu0 0.0
        %462 = vmatprep.subr.mxu0 0.0
        %463 = vmatpush1.msra.mxu0 0.0
        %464 = vmatprep.subr.mxu0 0.0
        %465 = vmatpush1.msra.mxu0 0.0
        %466 = vmatprep.subr.mxu0 0.0
        %467 = vmatpush1.msra.mxu0 0.0
        %468 = vmatprep.subr.mxu0 0.0
        %469 = vmatpush1.msra.mxu0 0.0
        %470 = vmatprep.subr.mxu0 0.0
        %471 = vmatpush1.msra.mxu0 0.0
        %472 = vmatprep.subr.mxu0 0.0
        %473 = vmatpush1.msra.mxu0 0.0
        %474 = vmatprep.subr.mxu0 0.0
        %475 = vmatpush1.msra.mxu0 0.0
        %476 = vmatprep.subr.mxu0 0.0
        %477 = vmatpush1.msra.mxu0 0.0
        %478 = vmatprep.subr.mxu0 0.0
        %479 = vmatpush1.msra.mxu0 0.0
        %480 = vmatprep.subr.mxu0 0.0
        %481 = vmatpush1.msra.mxu0 0.0
        %482 = vmatprep.subr.mxu0 0.0
        %483 = vmatpush1.msra.mxu0 0.0
        %484 = vmatprep.mubr.f32.mxu0 0.0
        %485 = vmatmul.mubr.f32.gmra.mrb[0].mxu0 %v373
        %v486 = vpop.f32.mrb[0].mxu0
        %v487 = vadd.f32 0.0, %v486
        %v488 = vpop.f32.mrb[0].mxu0
        %v489 = vadd.f32 0.0, %v488
        %490 = vmatprep.mubr.f32.mxu0 0.0
        %491 = vmatmul.mubr.f32.gmra.mrb[0].mxu0 %v376
        %v492 = vpop.f32.mrb[0].mxu0
        %v493 = vadd.f32 0.0, %v492
        %v494 = vpop.f32.mrb[0].mxu0
        %v495 = vadd.f32 0.0, %v494
        %496 = vmatprep.mubr.f32.mxu0 0.0
        %497 = vmatmul.mubr.f32.gmra.mrb[0].mxu0 %v379
        %v498 = vpop.f32.mrb[0].mxu0
        %v499 = vadd.f32 0.0, %v498
        %v500 = vpop.f32.mrb[0].mxu0
        %v501 = vadd.f32 0.0, %v500
        %502 = vmatprep.mubr.f32.mxu0 0.0
        %503 = vmatmul.mubr.f32.gmra.mrb[0].mxu0 %v382
        %v504 = vpop.f32.mrb[0].mxu0
        %v505 = vadd.f32 0.0, %v504
        %v506 = vpop.f32.mrb[0].mxu0
        %v507 = vadd.f32 0.0, %v506
        %508 = vmatprep.mubr.f32.mxu0 0.0
        %509 = vmatmul.mubr.f32.gmra.mrb[0].mxu0 %v385
        %v510 = vpop.f32.mrb[0].mxu0
        %v511 = vadd.f32 0.0, %v510
        %v512 = vpop.f32.mrb[0].mxu0
        %v513 = vadd.f32 0.0, %v512
        %514 = vmatprep.mubr.f32.mxu0 0.0
        %515 = vmatmul.mubr.f32.gmra.mrb[0].mxu0 %v388
        %v516 = vpop.f32.mrb[0].mxu0
        %v517 = vadd.f32 0.0, %v516
        %v518 = vpop.f32.mrb[0].mxu0
        %v519 = vadd.f32 0.0, %v518
        %520 = vmatprep.mubr.f32.mxu0 0.0
        %521 = vmatmul.mubr.f32.gmra.mrb[0].mxu0 %v391
        %v522 = vpop.f32.mrb[0].mxu0
        %v523 = vadd.f32 0.0, %v522
        %v524 = vpop.f32.mrb[0].mxu0
        %v525 = vadd.f32 0.0, %v524
        %526 = vmatprep.mubr.f32.mxu0 0.0
        %527 = vmatmul.mubr.f32.gmra.mrb[0].mxu0 %v394
        %v528 = vpop.f32.mrb[0].mxu0
        %v529 = vadd.f32 0.0, %v528
        %v530 = vpop.f32.mrb[0].mxu0
        %v531 = vadd.f32 0.0, %v530
        %532 = vmatprep.mubr.f32.mxu0 0.0
        %533 = vmatmul.mubr.f32.gmra.mrb[0].mxu0 %v397
        %v534 = vpop.f32.mrb[0].mxu0
        %v535 = vadd.f32 0.0, %v534
        %v536 = vpop.f32.mrb[0].mxu0
        %v537 = vadd.f32 0.0, %v536
        %538 = vmatprep.mubr.f32.mxu0 0.0
        %539 = vmatmul.mubr.f32.gmra.mrb[0].mxu0 %v400
        %v540 = vpop.f32.mrb[0].mxu0
        %v541 = vadd.f32 0.0, %v540
        %v542 = vpop.f32.mrb[0].mxu0
        %v543 = vadd.f32 0.0, %v542
        %544 = vmatprep.mubr.f32.mxu0 0.0
        %545 = vmatmul.mubr.f32.gmra.mrb[0].mxu0 %v403
        %v546 = vpop.f32.mrb[0].mxu0
        %v547 = vadd.f32 0.0, %v546
        %v548 = vpop.f32.mrb[0].mxu0
        %v549 = vadd.f32 0.0, %v548
        %550 = vmatprep.mubr.f32.mxu0 0.0
        %551 = vmatmul.mubr.f32.gmra.mrb[0].mxu0 %v406
        %v552 = vpop.f32.mrb[0].mxu0
        %v553 = vadd.f32 0.0, %v552
        %v554 = vpop.f32.mrb[0].mxu0
        %v555 = vadd.f32 0.0, %v554
        %556 = vmatprep.mubr.f32.mxu0 0.0
        %557 = vmatmul.mubr.f32.gmra.mrb[0].mxu0 %v409
        %v558 = vpop.f32.mrb[0].mxu0
        %v559 = vadd.f32 0.0, %v558
        %v560 = vpop.f32.mrb[0].mxu0
        %v561 = vadd.f32 0.0, %v560
        %562 = vmatprep.mubr.f32.mxu0 0.0
        %563 = vmatmul.mubr.f32.gmra.mrb[0].mxu0 %v412
        %v564 = vpop.f32.mrb[0].mxu0
        %v565 = vadd.f32 0.0, %v564
        %v566 = vpop.f32.mrb[0].mxu0
        %v567 = vadd.f32 0.0, %v566
        %568 = vmatprep.mubr.f32.mxu0 0.0
        %569 = vmatmul.mubr.f32.gmra.mrb[0].mxu0 %v415
        %v570 = vpop.f32.mrb[0].mxu0
        %v571 = vadd.f32 0.0, %v570
        %v572 = vpop.f32.mrb[0].mxu0
        %v573 = vadd.f32 0.0, %v572
        %574 = vmatprep.mubr.f32.mxu0 0.0
        %575 = vmatmul.mubr.f32.gmra.mrb[0].mxu0 %v418
        %v576 = vpop.f32.mrb[0].mxu0
        %v577 = vadd.f32 0.0, %v576
        %v578 = vpop.f32.mrb[0].mxu0
        %v579 = vadd.f32 0.0, %v578
        %580 = vdwg.mxu0
        %581 = vmatprep.subr.mxu0 0.0
        %582 = vmatpush1.msra.mxu0 %v361
        %583 = vmatprep.subr.mxu0 0.0
        %584 = vmatpush1.msra.mxu0 %v364
        %585 = vmatprep.subr.mxu0 0.0
        %586 = vmatpush1.msra.mxu0 %v367
        %587 = vmatprep.subr.mxu0 0.0
        %588 = vmatpush1.msra.mxu0 %v370
        %589 = vmatprep.subr.mxu0 0.0
        %590 = vmatpush1.msra.mxu0 0.0
        %591 = vmatprep.subr.mxu0 0.0
        %592 = vmatpush1.msra.mxu0 0.0
        %593 = vmatprep.subr.mxu0 0.0
        %594 = vmatpush1.msra.mxu0 0.0
        %595 = vmatprep.subr.mxu0 0.0
        %596 = vmatpush1.msra.mxu0 0.0
        %597 = vmatprep.subr.mxu0 0.0
        %598 = vmatpush1.msra.mxu0 0.0
        %599 = vmatprep.subr.mxu0 0.0
        %600 = vmatpush1.msra.mxu0 0.0
        %601 = vmatprep.subr.mxu0 0.0
        %602 = vmatpush1.msra.mxu0 0.0
        %603 = vmatprep.subr.mxu0 0.0
        %604 = vmatpush1.msra.mxu0 0.0
        %605 = vmatprep.subr.mxu0 0.0
        %606 = vmatpush1.msra.mxu0 0.0
        %607 = vmatprep.subr.mxu0 0.0
        %608 = vmatpush1.msra.mxu0 0.0
        %609 = vmatprep.subr.mxu0 0.0
        %610 = vmatpush1.msra.mxu0 0.0
        %611 = vmatprep.subr.mxu0 0.0
        %612 = vmatpush1.msra.mxu0 0.0
        %613 = vmatprep.subr.mxu0 0.0
        %614 = vmatpush1.msra.mxu0 0.0
        %615 = vmatprep.subr.mxu0 0.0
        %616 = vmatpush1.msra.mxu0 0.0
        %617 = vmatprep.subr.mxu0 0.0
        %618 = vmatpush1.msra.mxu0 0.0
        %619 = vmatprep.subr.mxu0 0.0
        %620 = vmatpush1.msra.mxu0 0.0
        %621 = vmatprep.subr.mxu0 0.0
        %622 = vmatpush1.msra.mxu0 0.0
        %623 = vmatprep.subr.mxu0 0.0
        %624 = vmatpush1.msra.mxu0 0.0
        %625 = vmatprep.subr.mxu0 0.0
        %626 = vmatpush1.msra.mxu0 0.0
        %627 = vmatprep.subr.mxu0 0.0
        %628 = vmatpush1.msra.mxu0 0.0
        %629 = vmatprep.subr.mxu0 0.0
        %630 = vmatpush1.msra.mxu0 0.0
        %631 = vmatprep.subr.mxu0 0.0
        %632 = vmatpush1.msra.mxu0 0.0
        %633 = vmatprep.subr.mxu0 0.0
        %634 = vmatpush1.msra.mxu0 0.0
        %635 = vmatprep.subr.mxu0 0.0
        %636 = vmatpush1.msra.mxu0 0.0
        %637 = vmatprep.subr.mxu0 0.0
        %638 = vmatpush1.msra.mxu0 0.0
        %639 = vmatprep.subr.mxu0 0.0
        %640 = vmatpush1.msra.mxu0 0.0
        %641 = vmatprep.subr.mxu0 0.0
        %642 = vmatpush1.msra.mxu0 0.0
        %643 = vmatprep.subr.mxu0 0.0
        %644 = vmatpush1.msra.mxu0 0.0
        %645 = vmatprep.mubr.f32.mxu0 0.0
        %646 = vmatmul.mubr.f32.gmra.mrb[0].mxu0 %v373
        %v647 = vpop.f32.mrb[0].mxu0
        %v648 = vadd.f32 0.0, %v647
        %v649 = vpop.f32.mrb[0].mxu0
        %650 = vmatprep.mubr.f32.mxu0 0.0
        %651 = vmatmul.mubr.f32.gmra.mrb[0].mxu0 %v376
        %v652 = vpop.f32.mrb[0].mxu0
        %v653 = vadd.f32 0.0, %v652
        %v654 = vpop.f32.mrb[0].mxu0
        %655 = vmatprep.mubr.f32.mxu0 0.0
        %656 = vmatmul.mubr.f32.gmra.mrb[0].mxu0 %v379
        %v657 = vpop.f32.mrb[0].mxu0
        %v658 = vadd.f32 0.0, %v657
        %v659 = vpop.f32.mrb[0].mxu0
        %660 = vmatprep.mubr.f32.mxu0 0.0
        %661 = vmatmul.mubr.f32.gmra.mrb[0].mxu0 %v382
        %v662 = vpop.f32.mrb[0].mxu0
        %v663 = vadd.f32 0.0, %v662
        %v664 = vpop.f32.mrb[0].mxu0
        %665 = vmatprep.mubr.f32.mxu0 0.0
        %666 = vmatmul.mubr.f32.gmra.mrb[0].mxu0 %v385
        %v667 = vpop.f32.mrb[0].mxu0
        %v668 = vadd.f32 0.0, %v667
        %v669 = vpop.f32.mrb[0].mxu0
        %670 = vmatprep.mubr.f32.mxu0 0.0
        %671 = vmatmul.mubr.f32.gmra.mrb[0].mxu0 %v388
        %v672 = vpop.f32.mrb[0].mxu0
        %v673 = vadd.f32 0.0, %v672
        %v674 = vpop.f32.mrb[0].mxu0
        %675 = vmatprep.mubr.f32.mxu0 0.0
        %676 = vmatmul.mubr.f32.gmra.mrb[0].mxu0 %v391
        %v677 = vpop.f32.mrb[0].mxu0
        %v678 = vadd.f32 0.0, %v677
        %v679 = vpop.f32.mrb[0].mxu0
        %680 = vmatprep.mubr.f32.mxu0 0.0
        %681 = vmatmul.mubr.f32.gmra.mrb[0].mxu0 %v394
        %v682 = vpop.f32.mrb[0].mxu0
        %v683 = vadd.f32 0.0, %v682
        %v684 = vpop.f32.mrb[0].mxu0
        %685 = vmatprep.mubr.f32.mxu0 0.0
        %686 = vmatmul.mubr.f32.gmra.mrb[0].mxu0 %v397
        %v687 = vpop.f32.mrb[0].mxu0
        %v688 = vadd.f32 0.0, %v687
        %v689 = vpop.f32.mrb[0].mxu0
        %690 = vmatprep.mubr.f32.mxu0 0.0
        %691 = vmatmul.mubr.f32.gmra.mrb[0].mxu0 %v400
        %v692 = vpop.f32.mrb[0].mxu0
        %v693 = vadd.f32 0.0, %v692
        %v694 = vpop.f32.mrb[0].mxu0
        %695 = vmatprep.mubr.f32.mxu0 0.0
        %696 = vmatmul.mubr.f32.gmra.mrb[0].mxu0 %v403
        %v697 = vpop.f32.mrb[0].mxu0
        %v698 = vadd.f32 0.0, %v697
        %v699 = vpop.f32.mrb[0].mxu0
        %700 = vmatprep.mubr.f32.mxu0 0.0
        %701 = vmatmul.mubr.f32.gmra.mrb[0].mxu0 %v406
        %v702 = vpop.f32.mrb[0].mxu0
        %v703 = vadd.f32 0.0, %v702
        %v704 = vpop.f32.mrb[0].mxu0
        %705 = vmatprep.mubr.f32.mxu0 0.0
        %706 = vmatmul.mubr.f32.gmra.mrb[0].mxu0 %v409
        %v707 = vpop.f32.mrb[0].mxu0
        %v708 = vadd.f32 0.0, %v707
        %v709 = vpop.f32.mrb[0].mxu0
        %710 = vmatprep.mubr.f32.mxu0 0.0
        %711 = vmatmul.mubr.f32.gmra.mrb[0].mxu0 %v412
        %v712 = vpop.f32.mrb[0].mxu0
        %v713 = vadd.f32 0.0, %v712
        %v714 = vpop.f32.mrb[0].mxu0
        %715 = vmatprep.mubr.f32.mxu0 0.0
        %716 = vmatmul.mubr.f32.gmra.mrb[0].mxu0 %v415
        %v717 = vpop.f32.mrb[0].mxu0
        %v718 = vadd.f32 0.0, %v717
        %v719 = vpop.f32.mrb[0].mxu0
        %720 = vmatprep.mubr.f32.mxu0 0.0
        %721 = vmatmul.mubr.f32.gmra.mrb[0].mxu0 %v418
        %v722 = vpop.f32.mrb[0].mxu0
        %v723 = vadd.f32 0.0, %v722
        %v724 = vpop.f32.mrb[0].mxu0
        %725 = vdwg.mxu0
        %v726 = vadd.f32 %v487, 0.0
        %v727 = vadd.f32 %v493, 0.0
        %v728 = vadd.f32 %v499, 0.0
        %v729 = vadd.f32 %v505, 0.0
        %v730 = vadd.f32 %v511, 0.0
        %v731 = vadd.f32 %v517, 0.0
        %v732 = vadd.f32 %v523, 0.0
        %v733 = vadd.f32 %v529, 0.0
        %v734 = vadd.f32 %v535, 0.0
        %v735 = vadd.f32 %v541, 0.0
        %v736 = vadd.f32 %v547, 0.0
        %v737 = vadd.f32 %v553, 0.0
        %v738 = vadd.f32 %v559, 0.0
        %v739 = vadd.f32 %v565, 0.0
        %v740 = vadd.f32 %v571, 0.0
        %v741 = vadd.f32 %v577, 0.0
        %vm758 = vcmask 1046528
        %v759 = vrot.slane %v489, 1
        %v760 = vrot.slane %v495, 1
        %v761 = vsel %vm758, %v759, %v760
        %v762 = vrot.slane %v501, 1
        %v763 = vrot.slane %v507, 1
        %v764 = vsel %vm758, %v762, %v763
        %v765 = vrot.slane %v513, 1
        %v766 = vrot.slane %v519, 1
        %v767 = vsel %vm758, %v765, %v766
        %v768 = vrot.slane %v525, 1
        %v769 = vrot.slane %v531, 1
        %v770 = vsel %vm758, %v768, %v769
        %v771 = vrot.slane %v537, 1
        %v772 = vrot.slane %v543, 1
        %v773 = vsel %vm758, %v771, %v772
        %v774 = vrot.slane %v549, 1
        %v775 = vrot.slane %v555, 1
        %v776 = vsel %vm758, %v774, %v775
        %v777 = vrot.slane %v561, 1
        %v778 = vrot.slane %v567, 1
        %v779 = vsel %vm758, %v777, %v778
        %v780 = vrot.slane %v573, 1
        %v781 = vrot.slane %v579, 1
        %v782 = vsel %vm758, %v780, %v781
        %v799 = vadd.f32 %v726, %v761
        %v800 = vadd.f32 %v727, %v760
        %v801 = vadd.f32 %v728, %v764
        %v802 = vadd.f32 %v729, %v763
        %v803 = vadd.f32 %v730, %v767
        %v804 = vadd.f32 %v731, %v766
        %v805 = vadd.f32 %v732, %v770
        %v806 = vadd.f32 %v733, %v769
        %v807 = vadd.f32 %v734, %v773
        %v808 = vadd.f32 %v735, %v772
        %v809 = vadd.f32 %v736, %v776
        %v810 = vadd.f32 %v737, %v775
        %v811 = vadd.f32 %v738, %v779
        %v812 = vadd.f32 %v739, %v778
        %v813 = vadd.f32 %v740, %v782
        %v814 = vadd.f32 %v741, %v781
        %vm831 = vcmask 1045504
        %v832 = vrot.slane %v648, 2
        %v833 = vrot.slane %v653, 2
        %v834 = vsel %vm831, %v832, %v833
        %v835 = vrot.slane %v658, 2
        %v836 = vrot.slane %v663, 2
        %v837 = vsel %vm831, %v835, %v836
        %v838 = vrot.slane %v668, 2
        %v839 = vrot.slane %v673, 2
        %v840 = vsel %vm831, %v838, %v839
        %v841 = vrot.slane %v678, 2
        %v842 = vrot.slane %v683, 2
        %v843 = vsel %vm831, %v841, %v842
        %v844 = vrot.slane %v688, 2
        %v845 = vrot.slane %v693, 2
        %v846 = vsel %vm831, %v844, %v845
        %v847 = vrot.slane %v698, 2
        %v848 = vrot.slane %v703, 2
        %v849 = vsel %vm831, %v847, %v848
        %v850 = vrot.slane %v708, 2
        %v851 = vrot.slane %v713, 2
        %v852 = vsel %vm831, %v850, %v851
        %v853 = vrot.slane %v718, 2
        %v854 = vrot.slane %v723, 2
        %v855 = vsel %vm831, %v853, %v854
        %v872 = vadd.f32 %v799, %v834
        %v873 = vadd.f32 %v800, %v833
        %v874 = vadd.f32 %v801, %v837
        %v875 = vadd.f32 %v802, %v836
        %v876 = vadd.f32 %v803, %v840
        %v877 = vadd.f32 %v804, %v839
        %v878 = vadd.f32 %v805, %v843
        %v879 = vadd.f32 %v806, %v842
        %v880 = vadd.f32 %v807, %v846
        %v881 = vadd.f32 %v808, %v845
        %v882 = vadd.f32 %v809, %v849
        %v883 = vadd.f32 %v810, %v848
        %v884 = vadd.f32 %v811, %v852
        %v885 = vadd.f32 %v812, %v851
        %v886 = vadd.f32 %v813, %v855
        %v887 = vadd.f32 %v814, %v854
        %v888 = vld [vmem:[%s2] sm:$0x1]
        %v890 = vlaneseq
        %v891 = vshrl.u32 %v890, 7
        %v892 = vsub.s32 0, %v891
        %v893 = vrot.slane %v888, %v892
        %v895 = vadd.f32 %v872, %v893
        %v896 = vadd.f32 %v873, %v893
        %v897 = vadd.f32 %v874, %v893
        %v898 = vadd.f32 %v875, %v893
        %v899 = vadd.f32 %v876, %v893
        %v900 = vadd.f32 %v877, %v893
        %v901 = vadd.f32 %v878, %v893
        %v902 = vadd.f32 %v879, %v893
        %v903 = vadd.f32 %v880, %v893
        %v904 = vadd.f32 %v881, %v893
        %v905 = vadd.f32 %v882, %v893
        %v906 = vadd.f32 %v883, %v893
        %v907 = vadd.f32 %v884, %v893
        %v908 = vadd.f32 %v885, %v893
        %v909 = vadd.f32 %v886, %v893
        %v910 = vadd.f32 %v887, %v893
        %v911 = vmax.f32 %v895, 0.0
        %v912 = vmax.f32 %v896, 0.0
        %v913 = vmax.f32 %v897, 0.0
        %v914 = vmax.f32 %v898, 0.0
        %v915 = vmax.f32 %v899, 0.0
        %v916 = vmax.f32 %v900, 0.0
        %v917 = vmax.f32 %v901, 0.0
        %v918 = vmax.f32 %v902, 0.0
        %v919 = vmax.f32 %v903, 0.0
        %v920 = vmax.f32 %v904, 0.0
        %v921 = vmax.f32 %v905, 0.0
        %v922 = vmax.f32 %v906, 0.0
        %v923 = vmax.f32 %v907, 0.0
        %v924 = vmax.f32 %v908, 0.0
        %v925 = vmax.f32 %v909, 0.0
        %v926 = vmax.f32 %v910, 0.0
        %v927 = vsel %vm831, %v912, -inf
        %v928 = vmax.f32 %v911, %v927
        %v929 = vrot.slane %v928, 4
        %v930 = vmax.f32 %v928, %v929
        %v931 = vrot.slane %v930, 2
        %v932 = vmax.f32 %v930, %v931
        %v933 = vrot.slane %v932, 1
        %v934 = vmax.f32 %v932, %v933
        %v935 = vsel %vm831, %v914, -inf
        %v936 = vmax.f32 %v913, %v935
        %v937 = vrot.slane %v936, 4
        %v938 = vmax.f32 %v936, %v937
        %v939 = vrot.slane %v938, 2
        %v940 = vmax.f32 %v938, %v939
        %v941 = vrot.slane %v940, 1
        %v942 = vmax.f32 %v940, %v941
        %v943 = vsel %vm831, %v916, -inf
        %v944 = vmax.f32 %v915, %v943
        %v945 = vrot.slane %v944, 4
        %v946 = vmax.f32 %v944, %v945
        %v947 = vrot.slane %v946, 2
        %v948 = vmax.f32 %v946, %v947
        %v949 = vrot.slane %v948, 1
        %v950 = vmax.f32 %v948, %v949
        %v951 = vsel %vm831, %v918, -inf
        %v952 = vmax.f32 %v917, %v951
        %v953 = vrot.slane %v952, 4
        %v954 = vmax.f32 %v952, %v953
        %v955 = vrot.slane %v954, 2
        %v956 = vmax.f32 %v954, %v955
        %v957 = vrot.slane %v956, 1
        %v958 = vmax.f32 %v956, %v957
        %v959 = vsel %vm831, %v920, -inf
        %v960 = vmax.f32 %v919, %v959
        %v961 = vrot.slane %v960, 4
        %v962 = vmax.f32 %v960, %v961
        %v963 = vrot.slane %v962, 2
        %v964 = vmax.f32 %v962, %v963
        %v965 = vrot.slane %v964, 1
        %v966 = vmax.f32 %v964, %v965
        %v967 = vsel %vm831, %v922, -inf
        %v968 = vmax.f32 %v921, %v967
        %v969 = vrot.slane %v968, 4
        %v970 = vmax.f32 %v968, %v969
        %v971 = vrot.slane %v970, 2
        %v972 = vmax.f32 %v970, %v971
        %v973 = vrot.slane %v972, 1
        %v974 = vmax.f32 %v972, %v973
        %v975 = vsel %vm831, %v924, -inf
        %v976 = vmax.f32 %v923, %v975
        %v977 = vrot.slane %v976, 4
        %v978 = vmax.f32 %v976, %v977
        %v979 = vrot.slane %v978, 2
        %v980 = vmax.f32 %v978, %v979
        %v981 = vrot.slane %v980, 1
        %v982 = vmax.f32 %v980, %v981
        %v983 = vsel %vm831, %v926, -inf
        %v984 = vmax.f32 %v925, %v983
        %v985 = vrot.slane %v984, 4
        %v986 = vmax.f32 %v984, %v985
        %v987 = vrot.slane %v986, 2
        %v988 = vmax.f32 %v986, %v987
        %v989 = vrot.slane %v988, 1
        %v990 = vmax.f32 %v988, %v989
        %vm999 = vcmask 1041409
        %v1000 = vsel %vm999, %v942, %v934
        %vm1001 = vcmask 1042434
        %v1002 = vsel %vm1001, %v950, %v1000
        %vm1003 = vcmask 1043459
        %v1004 = vsel %vm1003, %v958, %v1002
        %vm1005 = vcmask 1044484
        %v1006 = vsel %vm1005, %v966, %v1004
        %vm1007 = vcmask 1045509
        %v1008 = vsel %vm1007, %v974, %v1006
        %vm1009 = vcmask 1046534
        %v1010 = vsel %vm1009, %v982, %v1008
        %vm1011 = vcmask 1047559
        %v1012 = vsel %vm1011, %v990, %v1010
        %1014 = vst [vmem:[%s341] sm:$0xff] %v1012
        %v1015 = vld [vmem:[#allocation7] sm:$0xff]
        %v1016 = vld [vmem:[#allocation7 + $0x8] sm:$0xff]
        %v1017 = vld [vmem:[#allocation7 + $0x10] sm:$0xff]
        %v1018 = vld [vmem:[#allocation7 + $0x18] sm:$0xff]
        %v1019 = vld [vmem:[#allocation7 + $0x20] sm:$0xff]
        %v1020 = vld [vmem:[#allocation7 + $0x28] sm:$0xff]
        %v1021 = vld [vmem:[#allocation7 + $0x30] sm:$0xff]
        %v1022 = vld [vmem:[#allocation7 + $0x38] sm:$0xff]
        %v1023 = vld [vmem:[#allocation7 + $0x40] sm:$0xff]
        %v1024 = vld [vmem:[#allocation7 + $0x48] sm:$0xff]
        %v1025 = vld [vmem:[#allocation7 + $0x50] sm:$0xff]
        %v1026 = vld [vmem:[#allocation7 + $0x58] sm:$0xff]
        %v1027 = vld [vmem:[#allocation7 + $0x60] sm:$0xff]
        %v1028 = vld [vmem:[#allocation7 + $0x68] sm:$0xff]
        %v1029 = vld [vmem:[#allocation7 + $0x70] sm:$0xff]
        %v1030 = vld [vmem:[#allocation7 + $0x78] sm:$0xff]
        %1031 = vmatprep.subr.mxu0 %v1016
        %1032 = vmatpush1.msra.mxu0 %v1015
        %1033 = vmatprep.subr.mxu0 %v1020
        %1034 = vmatpush1.msra.mxu0 %v1019
        %1035 = vmatprep.subr.mxu0 %v1024
        %1036 = vmatpush1.msra.mxu0 %v1023
        %1037 = vmatprep.subr.mxu0 %v1028
        %1038 = vmatpush1.msra.mxu0 %v1027
        %1039 = vmatprep.subr.mxu0 0.0
        %1040 = vmatpush1.msra.mxu0 0.0
        %1041 = vmatprep.subr.mxu0 0.0
        %1042 = vmatpush1.msra.mxu0 0.0
        %1043 = vmatprep.subr.mxu0 0.0
        %1044 = vmatpush1.msra.mxu0 0.0
        %1045 = vmatprep.subr.mxu0 0.0
        %1046 = vmatpush1.msra.mxu0 0.0
        %1047 = vmatprep.subr.mxu0 0.0
        %1048 = vmatpush1.msra.mxu0 0.0
        %1049 = vmatprep.subr.mxu0 0.0
        %1050 = vmatpush1.msra.mxu0 0.0
        %1051 = vmatprep.subr.mxu0 0.0
        %1052 = vmatpush1.msra.mxu0 0.0
        %1053 = vmatprep.subr.mxu0 0.0
        %1054 = vmatpush1.msra.mxu0 0.0
        %1055 = vmatprep.subr.mxu0 0.0
        %1056 = vmatpush1.msra.mxu0 0.0
        %1057 = vmatprep.subr.mxu0 0.0
        %1058 = vmatpush1.msra.mxu0 0.0
        %1059 = vmatprep.subr.mxu0 0.0
        %1060 = vmatpush1.msra.mxu0 0.0
        %1061 = vmatprep.subr.mxu0 0.0
        %1062 = vmatpush1.msra.mxu0 0.0
        %1063 = vmatprep.subr.mxu0 0.0
        %1064 = vmatpush1.msra.mxu0 0.0
        %1065 = vmatprep.subr.mxu0 0.0
        %1066 = vmatpush1.msra.mxu0 0.0
        %1067 = vmatprep.subr.mxu0 0.0
        %1068 = vmatpush1.msra.mxu0 0.0
        %1069 = vmatprep.subr.mxu0 0.0
        %1070 = vmatpush1.msra.mxu0 0.0
        %1071 = vmatprep.subr.mxu0 0.0
        %1072 = vmatpush1.msra.mxu0 0.0
        %1073 = vmatprep.subr.mxu0 0.0
        %1074 = vmatpush1.msra.mxu0 0.0
        %1075 = vmatprep.subr.mxu0 0.0
        %1076 = vmatpush1.msra.mxu0 0.0
        %1077 = vmatprep.subr.mxu0 0.0
        %1078 = vmatpush1.msra.mxu0 0.0
        %1079 = vmatprep.subr.mxu0 0.0
        %1080 = vmatpush1.msra.mxu0 0.0
        %1081 = vmatprep.subr.mxu0 0.0
        %1082 = vmatpush1.msra.mxu0 0.0
        %1083 = vmatprep.subr.mxu0 0.0
        %1084 = vmatpush1.msra.mxu0 0.0
        %1085 = vmatprep.subr.mxu0 0.0
        %1086 = vmatpush1.msra.mxu0 0.0
        %1087 = vmatprep.subr.mxu0 0.0
        %1088 = vmatpush1.msra.mxu0 0.0
        %1089 = vmatprep.subr.mxu0 0.0
        %1090 = vmatpush1.msra.mxu0 0.0
        %1091 = vmatprep.subr.mxu0 0.0
        %1092 = vmatpush1.msra.mxu0 0.0
        %1093 = vmatprep.subr.mxu0 0.0
        %1094 = vmatpush1.msra.mxu0 0.0
        %1095 = vmatprep.mubr.f32.mxu0 0.0
        %1096 = vmatmul.mubr.f32.gmra.mrb[0].mxu0 %v373
        %v1097 = vpop.f32.mrb[0].mxu0
        %v1098 = vadd.f32 0.0, %v1097
        %v1099 = vpop.f32.mrb[0].mxu0
        %v1100 = vadd.f32 0.0, %v1099
        %1101 = vmatprep.mubr.f32.mxu0 0.0
        %1102 = vmatmul.mubr.f32.gmra.mrb[0].mxu0 %v376
        %v1103 = vpop.f32.mrb[0].mxu0
        %v1104 = vadd.f32 0.0, %v1103
        %v1105 = vpop.f32.mrb[0].mxu0
        %v1106 = vadd.f32 0.0, %v1105
        %1107 = vmatprep.mubr.f32.mxu0 0.0
        %1108 = vmatmul.mubr.f32.gmra.mrb[0].mxu0 %v379
        %v1109 = vpop.f32.mrb[0].mxu0
        %v1110 = vadd.f32 0.0, %v1109
        %v1111 = vpop.f32.mrb[0].mxu0
        %v1112 = vadd.f32 0.0, %v1111
        %1113 = vmatprep.mubr.f32.mxu0 0.0
        %1114 = vmatmul.mubr.f32.gmra.mrb[0].mxu0 %v382
        %v1115 = vpop.f32.mrb[0].mxu0
        %v1116 = vadd.f32 0.0, %v1115
        %v1117 = vpop.f32.mrb[0].mxu0
        %v1118 = vadd.f32 0.0, %v1117
        %1119 = vmatprep.mubr.f32.mxu0 0.0
        %1120 = vmatmul.mubr.f32.gmra.mrb[0].mxu0 %v385
        %v1121 = vpop.f32.mrb[0].mxu0
        %v1122 = vadd.f32 0.0, %v1121
        %v1123 = vpop.f32.mrb[0].mxu0
        %v1124 = vadd.f32 0.0, %v1123
        %1125 = vmatprep.mubr.f32.mxu0 0.0
        %1126 = vmatmul.mubr.f32.gmra.mrb[0].mxu0 %v388
        %v1127 = vpop.f32.mrb[0].mxu0
        %v1128 = vadd.f32 0.0, %v1127
        %v1129 = vpop.f32.mrb[0].mxu0
        %v1130 = vadd.f32 0.0, %v1129
        %1131 = vmatprep.mubr.f32.mxu0 0.0
        %1132 = vmatmul.mubr.f32.gmra.mrb[0].mxu0 %v391
        %v1133 = vpop.f32.mrb[0].mxu0
        %v1134 = vadd.f32 0.0, %v1133
        %v1135 = vpop.f32.mrb[0].mxu0
        %v1136 = vadd.f32 0.0, %v1135
        %1137 = vmatprep.mubr.f32.mxu0 0.0
        %1138 = vmatmul.mubr.f32.gmra.mrb[0].mxu0 %v394
        %v1139 = vpop.f32.mrb[0].mxu0
        %v1140 = vadd.f32 0.0, %v1139
        %v1141 = vpop.f32.mrb[0].mxu0
        %v1142 = vadd.f32 0.0, %v1141
        %1143 = vmatprep.mubr.f32.mxu0 0.0
        %1144 = vmatmul.mubr.f32.gmra.mrb[0].mxu0 %v397
        %v1145 = vpop.f32.mrb[0].mxu0
        %v1146 = vadd.f32 0.0, %v1145
        %v1147 = vpop.f32.mrb[0].mxu0
        %v1148 = vadd.f32 0.0, %v1147
        %1149 = vmatprep.mubr.f32.mxu0 0.0
        %1150 = vmatmul.mubr.f32.gmra.mrb[0].mxu0 %v400
        %v1151 = vpop.f32.mrb[0].mxu0
        %v1152 = vadd.f32 0.0, %v1151
        %v1153 = vpop.f32.mrb[0].mxu0
        %v1154 = vadd.f32 0.0, %v1153
        %1155 = vmatprep.mubr.f32.mxu0 0.0
        %1156 = vmatmul.mubr.f32.gmra.mrb[0].mxu0 %v403
        %v1157 = vpop.f32.mrb[0].mxu0
        %v1158 = vadd.f32 0.0, %v1157
        %v1159 = vpop.f32.mrb[0].mxu0
        %v1160 = vadd.f32 0.0, %v1159
        %1161 = vmatprep.mubr.f32.mxu0 0.0
        %1162 = vmatmul.mubr.f32.gmra.mrb[0].mxu0 %v406
        %v1163 = vpop.f32.mrb[0].mxu0
        %v1164 = vadd.f32 0.0, %v1163
        %v1165 = vpop.f32.mrb[0].mxu0
        %v1166 = vadd.f32 0.0, %v1165
        %1167 = vmatprep.mubr.f32.mxu0 0.0
        %1168 = vmatmul.mubr.f32.gmra.mrb[0].mxu0 %v409
        %v1169 = vpop.f32.mrb[0].mxu0
        %v1170 = vadd.f32 0.0, %v1169
        %v1171 = vpop.f32.mrb[0].mxu0
        %v1172 = vadd.f32 0.0, %v1171
        %1173 = vmatprep.mubr.f32.mxu0 0.0
        %1174 = vmatmul.mubr.f32.gmra.mrb[0].mxu0 %v412
        %v1175 = vpop.f32.mrb[0].mxu0
        %v1176 = vadd.f32 0.0, %v1175
        %v1177 = vpop.f32.mrb[0].mxu0
        %v1178 = vadd.f32 0.0, %v1177
        %1179 = vmatprep.mubr.f32.mxu0 0.0
        %1180 = vmatmul.mubr.f32.gmra.mrb[0].mxu0 %v415
        %v1181 = vpop.f32.mrb[0].mxu0
        %v1182 = vadd.f32 0.0, %v1181
        %v1183 = vpop.f32.mrb[0].mxu0
        %v1184 = vadd.f32 0.0, %v1183
        %1185 = vmatprep.mubr.f32.mxu0 0.0
        %1186 = vmatmul.mubr.f32.gmra.mrb[0].mxu0 %v418
        %v1187 = vpop.f32.mrb[0].mxu0
        %v1188 = vadd.f32 0.0, %v1187
        %v1189 = vpop.f32.mrb[0].mxu0
        %v1190 = vadd.f32 0.0, %v1189
        %1191 = vdwg.mxu0
        %1192 = vmatprep.subr.mxu0 %v1018
        %1193 = vmatpush1.msra.mxu0 %v1017
        %1194 = vmatprep.subr.mxu0 %v1022
        %1195 = vmatpush1.msra.mxu0 %v1021
        %1196 = vmatprep.subr.mxu0 %v1026
        %1197 = vmatpush1.msra.mxu0 %v1025
        %1198 = vmatprep.subr.mxu0 %v1030
        %1199 = vmatpush1.msra.mxu0 %v1029
        %1200 = vmatprep.subr.mxu0 0.0
        %1201 = vmatpush1.msra.mxu0 0.0
        %1202 = vmatprep.subr.mxu0 0.0
        %1203 = vmatpush1.msra.mxu0 0.0
        %1204 = vmatprep.subr.mxu0 0.0
        %1205 = vmatpush1.msra.mxu0 0.0
        %1206 = vmatprep.subr.mxu0 0.0
        %1207 = vmatpush1.msra.mxu0 0.0
        %1208 = vmatprep.subr.mxu0 0.0
        %1209 = vmatpush1.msra.mxu0 0.0
        %1210 = vmatprep.subr.mxu0 0.0
        %1211 = vmatpush1.msra.mxu0 0.0
        %1212 = vmatprep.subr.mxu0 0.0
        %1213 = vmatpush1.msra.mxu0 0.0
        %1214 = vmatprep.subr.mxu0 0.0
        %1215 = vmatpush1.msra.mxu0 0.0
        %1216 = vmatprep.subr.mxu0 0.0
        %1217 = vmatpush1.msra.mxu0 0.0
        %1218 = vmatprep.subr.mxu0 0.0
        %1219 = vmatpush1.msra.mxu0 0.0
        %1220 = vmatprep.subr.mxu0 0.0
        %1221 = vmatpush1.msra.mxu0 0.0
        %1222 = vmatprep.subr.mxu0 0.0
        %1223 = vmatpush1.msra.mxu0 0.0
        %1224 = vmatprep.subr.mxu0 0.0
        %1225 = vmatpush1.msra.mxu0 0.0
        %1226 = vmatprep.subr.mxu0 0.0
        %1227 = vmatpush1.msra.mxu0 0.0
        %1228 = vmatprep.subr.mxu0 0.0
        %1229 = vmatpush1.msra.mxu0 0.0
        %1230 = vmatprep.subr.mxu0 0.0
        %1231 = vmatpush1.msra.mxu0 0.0
        %1232 = vmatprep.subr.mxu0 0.0
        %1233 = vmatpush1.msra.mxu0 0.0
        %1234 = vmatprep.subr.mxu0 0.0
        %1235 = vmatpush1.msra.mxu0 0.0
        %1236 = vmatprep.subr.mxu0 0.0
        %1237 = vmatpush1.msra.mxu0 0.0
        %1238 = vmatprep.subr.mxu0 0.0
        %1239 = vmatpush1.msra.mxu0 0.0
        %1240 = vmatprep.subr.mxu0 0.0
        %1241 = vmatpush1.msra.mxu0 0.0
        %1242 = vmatprep.subr.mxu0 0.0
        %1243 = vmatpush1.msra.mxu0 0.0
        %1244 = vmatprep.subr.mxu0 0.0
        %1245 = vmatpush1.msra.mxu0 0.0
        %1246 = vmatprep.subr.mxu0 0.0
        %1247 = vmatpush1.msra.mxu0 0.0
        %1248 = vmatprep.subr.mxu0 0.0
        %1249 = vmatpush1.msra.mxu0 0.0
        %1250 = vmatprep.subr.mxu0 0.0
        %1251 = vmatpush1.msra.mxu0 0.0
        %1252 = vmatprep.subr.mxu0 0.0
        %1253 = vmatpush1.msra.mxu0 0.0
        %1254 = vmatprep.subr.mxu0 0.0
        %1255 = vmatpush1.msra.mxu0 0.0
        %1256 = vmatprep.mubr.f32.mxu0 0.0
        %1257 = vmatmul.mubr.f32.gmra.mrb[0].mxu0 %v373
        %v1258 = vpop.f32.mrb[0].mxu0
        %v1259 = vadd.f32 0.0, %v1258
        %v1260 = vpop.f32.mrb[0].mxu0
        %v1261 = vadd.f32 0.0, %v1260
        %1262 = vmatprep.mubr.f32.mxu0 0.0
        %1263 = vmatmul.mubr.f32.gmra.mrb[0].mxu0 %v376
        %v1264 = vpop.f32.mrb[0].mxu0
        %v1265 = vadd.f32 0.0, %v1264
        %v1266 = vpop.f32.mrb[0].mxu0
        %v1267 = vadd.f32 0.0, %v1266
        %1268 = vmatprep.mubr.f32.mxu0 0.0
        %1269 = vmatmul.mubr.f32.gmra.mrb[0].mxu0 %v379
        %v1270 = vpop.f32.mrb[0].mxu0
        %v1271 = vadd.f32 0.0, %v1270
        %v1272 = vpop.f32.mrb[0].mxu0
        %v1273 = vadd.f32 0.0, %v1272
        %1274 = vmatprep.mubr.f32.mxu0 0.0
        %1275 = vmatmul.mubr.f32.gmra.mrb[0].mxu0 %v382
        %v1276 = vpop.f32.mrb[0].mxu0
        %v1277 = vadd.f32 0.0, %v1276
        %v1278 = vpop.f32.mrb[0].mxu0
        %v1279 = vadd.f32 0.0, %v1278
        %1280 = vmatprep.mubr.f32.mxu0 0.0
        %1281 = vmatmul.mubr.f32.gmra.mrb[0].mxu0 %v385
        %v1282 = vpop.f32.mrb[0].mxu0
        %v1283 = vadd.f32 0.0, %v1282
        %v1284 = vpop.f32.mrb[0].mxu0
        %v1285 = vadd.f32 0.0, %v1284
        %1286 = vmatprep.mubr.f32.mxu0 0.0
        %1287 = vmatmul.mubr.f32.gmra.mrb[0].mxu0 %v388
        %v1288 = vpop.f32.mrb[0].mxu0
        %v1289 = vadd.f32 0.0, %v1288
        %v1290 = vpop.f32.mrb[0].mxu0
        %v1291 = vadd.f32 0.0, %v1290
        %1292 = vmatprep.mubr.f32.mxu0 0.0
        %1293 = vmatmul.mubr.f32.gmra.mrb[0].mxu0 %v391
        %v1294 = vpop.f32.mrb[0].mxu0
        %v1295 = vadd.f32 0.0, %v1294
        %v1296 = vpop.f32.mrb[0].mxu0
        %v1297 = vadd.f32 0.0, %v1296
        %1298 = vmatprep.mubr.f32.mxu0 0.0
        %1299 = vmatmul.mubr.f32.gmra.mrb[0].mxu0 %v394
        %v1300 = vpop.f32.mrb[0].mxu0
        %v1301 = vadd.f32 0.0, %v1300
        %v1302 = vpop.f32.mrb[0].mxu0
        %v1303 = vadd.f32 0.0, %v1302
        %1304 = vmatprep.mubr.f32.mxu0 0.0
        %1305 = vmatmul.mubr.f32.gmra.mrb[0].mxu0 %v397
        %v1306 = vpop.f32.mrb[0].mxu0
        %v1307 = vadd.f32 0.0, %v1306
        %v1308 = vpop.f32.mrb[0].mxu0
        %v1309 = vadd.f32 0.0, %v1308
        %1310 = vmatprep.mubr.f32.mxu0 0.0
        %1311 = vmatmul.mubr.f32.gmra.mrb[0].mxu0 %v400
        %v1312 = vpop.f32.mrb[0].mxu0
        %v1313 = vadd.f32 0.0, %v1312
        %v1314 = vpop.f32.mrb[0].mxu0
        %v1315 = vadd.f32 0.0, %v1314
        %1316 = vmatprep.mubr.f32.mxu0 0.0
        %1317 = vmatmul.mubr.f32.gmra.mrb[0].mxu0 %v403
        %v1318 = vpop.f32.mrb[0].mxu0
        %v1319 = vadd.f32 0.0, %v1318
        %v1320 = vpop.f32.mrb[0].mxu0
        %v1321 = vadd.f32 0.0, %v1320
        %1322 = vmatprep.mubr.f32.mxu0 0.0
        %1323 = vmatmul.mubr.f32.gmra.mrb[0].mxu0 %v406
        %v1324 = vpop.f32.mrb[0].mxu0
        %v1325 = vadd.f32 0.0, %v1324
        %v1326 = vpop.f32.mrb[0].mxu0
        %v1327 = vadd.f32 0.0, %v1326
        %1328 = vmatprep.mubr.f32.mxu0 0.0
        %1329 = vmatmul.mubr.f32.gmra.mrb[0].mxu0 %v409
        %v1330 = vpop.f32.mrb[0].mxu0
        %v1331 = vadd.f32 0.0, %v1330
        %v1332 = vpop.f32.mrb[0].mxu0
        %v1333 = vadd.f32 0.0, %v1332
        %1334 = vmatprep.mubr.f32.mxu0 0.0
        %1335 = vmatmul.mubr.f32.gmra.mrb[0].mxu0 %v412
        %v1336 = vpop.f32.mrb[0].mxu0
        %v1337 = vadd.f32 0.0, %v1336
        %v1338 = vpop.f32.mrb[0].mxu0
        %v1339 = vadd.f32 0.0, %v1338
        %1340 = vmatprep.mubr.f32.mxu0 0.0
        %1341 = vmatmul.mubr.f32.gmra.mrb[0].mxu0 %v415
        %v1342 = vpop.f32.mrb[0].mxu0
        %v1343 = vadd.f32 0.0, %v1342
        %v1344 = vpop.f32.mrb[0].mxu0
        %v1345 = vadd.f32 0.0, %v1344
        %1346 = vmatprep.mubr.f32.mxu0 0.0
        %1347 = vmatmul.mubr.f32.gmra.mrb[0].mxu0 %v418
        %v1348 = vpop.f32.mrb[0].mxu0
        %v1349 = vadd.f32 0.0, %v1348
        %v1350 = vpop.f32.mrb[0].mxu0
        %v1351 = vadd.f32 0.0, %v1350
        %1352 = vdwg.mxu0
        %v1353 = vadd.f32 %v1098, 0.0
        %v1354 = vadd.f32 %v1104, 0.0
        %v1355 = vadd.f32 %v1110, 0.0
        %v1356 = vadd.f32 %v1116, 0.0
        %v1357 = vadd.f32 %v1122, 0.0
        %v1358 = vadd.f32 %v1128, 0.0
        %v1359 = vadd.f32 %v1134, 0.0
        %v1360 = vadd.f32 %v1140, 0.0
        %v1361 = vadd.f32 %v1146, 0.0
        %v1362 = vadd.f32 %v1152, 0.0
        %v1363 = vadd.f32 %v1158, 0.0
        %v1364 = vadd.f32 %v1164, 0.0
        %v1365 = vadd.f32 %v1170, 0.0
        %v1366 = vadd.f32 %v1176, 0.0
        %v1367 = vadd.f32 %v1182, 0.0
        %v1368 = vadd.f32 %v1188, 0.0
        %v1385 = vrot.slane %v1100, 1
        %v1386 = vrot.slane %v1106, 1
        %v1387 = vsel %vm758, %v1385, %v1386
        %v1388 = vrot.slane %v1112, 1
        %v1389 = vrot.slane %v1118, 1
        %v1390 = vsel %vm758, %v1388, %v1389
        %v1391 = vrot.slane %v1124, 1
        %v1392 = vrot.slane %v1130, 1
        %v1393 = vsel %vm758, %v1391, %v1392
        %v1394 = vrot.slane %v1136, 1
        %v1395 = vrot.slane %v1142, 1
        %v1396 = vsel %vm758, %v1394, %v1395
        %v1397 = vrot.slane %v1148, 1
        %v1398 = vrot.slane %v1154, 1
        %v1399 = vsel %vm758, %v1397, %v1398
        %v1400 = vrot.slane %v1160, 1
        %v1401 = vrot.slane %v1166, 1
        %v1402 = vsel %vm758, %v1400, %v1401
        %v1403 = vrot.slane %v1172, 1
        %v1404 = vrot.slane %v1178, 1
        %v1405 = vsel %vm758, %v1403, %v1404
        %v1406 = vrot.slane %v1184, 1
        %v1407 = vrot.slane %v1190, 1
        %v1408 = vsel %vm758, %v1406, %v1407
        %v1425 = vadd.f32 %v1353, %v1387
        %v1426 = vadd.f32 %v1354, %v1386
        %v1427 = vadd.f32 %v1355, %v1390
        %v1428 = vadd.f32 %v1356, %v1389
        %v1429 = vadd.f32 %v1357, %v1393
        %v1430 = vadd.f32 %v1358, %v1392
        %v1431 = vadd.f32 %v1359, %v1396
        %v1432 = vadd.f32 %v1360, %v1395
        %v1433 = vadd.f32 %v1361, %v1399
        %v1434 = vadd.f32 %v1362, %v1398
        %v1435 = vadd.f32 %v1363, %v1402
        %v1436 = vadd.f32 %v1364, %v1401
        %v1437 = vadd.f32 %v1365, %v1405
        %v1438 = vadd.f32 %v1366, %v1404
        %v1439 = vadd.f32 %v1367, %v1408
        %v1440 = vadd.f32 %v1368, %v1407
        %v1457 = vrot.slane %v1259, 2
        %v1458 = vrot.slane %v1265, 2
        %v1459 = vsel %vm831, %v1457, %v1458
        %v1460 = vrot.slane %v1271, 2
        %v1461 = vrot.slane %v1277, 2
        %v1462 = vsel %vm831, %v1460, %v1461
        %v1463 = vrot.slane %v1283, 2
        %v1464 = vrot.slane %v1289, 2
        %v1465 = vsel %vm831, %v1463, %v1464
        %v1466 = vrot.slane %v1295, 2
        %v1467 = vrot.slane %v1301, 2
        %v1468 = vsel %vm831, %v1466, %v1467
        %v1469 = vrot.slane %v1307, 2
        %v1470 = vrot.slane %v1313, 2
        %v1471 = vsel %vm831, %v1469, %v1470
        %v1472 = vrot.slane %v1319, 2
        %v1473 = vrot.slane %v1325, 2
        %v1474 = vsel %vm831, %v1472, %v1473
        %v1475 = vrot.slane %v1331, 2
        %v1476 = vrot.slane %v1337, 2
        %v1477 = vsel %vm831, %v1475, %v1476
        %v1478 = vrot.slane %v1343, 2
        %v1479 = vrot.slane %v1349, 2
        %v1480 = vsel %vm831, %v1478, %v1479
        %v1497 = vadd.f32 %v1425, %v1459
        %v1498 = vadd.f32 %v1426, %v1458
        %v1499 = vadd.f32 %v1427, %v1462
        %v1500 = vadd.f32 %v1428, %v1461
        %v1501 = vadd.f32 %v1429, %v1465
        %v1502 = vadd.f32 %v1430, %v1464
        %v1503 = vadd.f32 %v1431, %v1468
        %v1504 = vadd.f32 %v1432, %v1467
        %v1505 = vadd.f32 %v1433, %v1471
        %v1506 = vadd.f32 %v1434, %v1470
        %v1507 = vadd.f32 %v1435, %v1474
        %v1508 = vadd.f32 %v1436, %v1473
        %v1509 = vadd.f32 %v1437, %v1477
        %v1510 = vadd.f32 %v1438, %v1476
        %v1511 = vadd.f32 %v1439, %v1480
        %v1512 = vadd.f32 %v1440, %v1479
        %vm1529 = vcmask 1044480
        %v1530 = vrot.slane %v1261, 3
        %v1531 = vrot.slane %v1267, 3
        %v1532 = vsel %vm1529, %v1530, %v1531
        %v1533 = vrot.slane %v1273, 3
        %v1534 = vrot.slane %v1279, 3
        %v1535 = vsel %vm1529, %v1533, %v1534
        %v1536 = vrot.slane %v1285, 3
        %v1537 = vrot.slane %v1291, 3
        %v1538 = vsel %vm1529, %v1536, %v1537
        %v1539 = vrot.slane %v1297, 3
        %v1540 = vrot.slane %v1303, 3
        %v1541 = vsel %vm1529, %v1539, %v1540
        %v1542 = vrot.slane %v1309, 3
        %v1543 = vrot.slane %v1315, 3
        %v1544 = vsel %vm1529, %v1542, %v1543
        %v1545 = vrot.slane %v1321, 3
        %v1546 = vrot.slane %v1327, 3
        %v1547 = vsel %vm1529, %v1545, %v1546
        %v1548 = vrot.slane %v1333, 3
        %v1549 = vrot.slane %v1339, 3
        %v1550 = vsel %vm1529, %v1548, %v1549
        %v1551 = vrot.slane %v1345, 3
        %v1552 = vrot.slane %v1351, 3
        %v1553 = vsel %vm1529, %v1551, %v1552
        %v1570 = vadd.f32 %v1497, %v1532
        %v1571 = vadd.f32 %v1498, %v1531
        %v1572 = vadd.f32 %v1499, %v1535
        %v1573 = vadd.f32 %v1500, %v1534
        %v1574 = vadd.f32 %v1501, %v1538
        %v1575 = vadd.f32 %v1502, %v1537
        %v1576 = vadd.f32 %v1503, %v1541
        %v1577 = vadd.f32 %v1504, %v1540
        %v1578 = vadd.f32 %v1505, %v1544
        %v1579 = vadd.f32 %v1506, %v1543
        %v1580 = vadd.f32 %v1507, %v1547
        %v1581 = vadd.f32 %v1508, %v1546
        %v1582 = vadd.f32 %v1509, %v1550
        %v1583 = vadd.f32 %v1510, %v1549
        %v1584 = vadd.f32 %v1511, %v1553
        %v1585 = vadd.f32 %v1512, %v1552
        %v1586 = vld [vmem:[%s4] sm:$0x1]
        %v1588 = vlaneseq
        %v1589 = vshrl.u32 %v1588, 7
        %v1590 = vsub.s32 0, %v1589
        %v1591 = vrot.slane %v1586, %v1590
        %v1593 = vadd.f32 %v1570, %v1591
        %v1594 = vadd.f32 %v1571, %v1591
        %v1595 = vadd.f32 %v1572, %v1591
        %v1596 = vadd.f32 %v1573, %v1591
        %v1597 = vadd.f32 %v1574, %v1591
        %v1598 = vadd.f32 %v1575, %v1591
        %v1599 = vadd.f32 %v1576, %v1591
        %v1600 = vadd.f32 %v1577, %v1591
        %v1601 = vadd.f32 %v1578, %v1591
        %v1602 = vadd.f32 %v1579, %v1591
        %v1603 = vadd.f32 %v1580, %v1591
        %v1604 = vadd.f32 %v1581, %v1591
        %v1605 = vadd.f32 %v1582, %v1591
        %v1606 = vadd.f32 %v1583, %v1591
        %v1607 = vadd.f32 %v1584, %v1591
        %v1608 = vadd.f32 %v1585, %v1591
        %v1609 = vmax.f32 %v1593, 0.0
        %v1610 = vmax.f32 %v1594, 0.0
        %v1611 = vmax.f32 %v1595, 0.0
        %v1612 = vmax.f32 %v1596, 0.0
        %v1613 = vmax.f32 %v1597, 0.0
        %v1614 = vmax.f32 %v1598, 0.0
        %v1615 = vmax.f32 %v1599, 0.0
        %v1616 = vmax.f32 %v1600, 0.0
        %v1617 = vmax.f32 %v1601, 0.0
        %v1618 = vmax.f32 %v1602, 0.0
        %v1619 = vmax.f32 %v1603, 0.0
        %v1620 = vmax.f32 %v1604, 0.0
        %v1621 = vmax.f32 %v1605, 0.0
        %v1622 = vmax.f32 %v1606, 0.0
        %v1623 = vmax.f32 %v1607, 0.0
        %v1624 = vmax.f32 %v1608, 0.0
        %v1625 = vsel %vm1529, %v1610, -inf
        %v1626 = vmax.f32 %v1609, %v1625
        %v1627 = vrot.slane %v1626, 4
        %v1628 = vmax.f32 %v1626, %v1627
        %v1629 = vrot.slane %v1628, 2
        %v1630 = vmax.f32 %v1628, %v1629
        %v1631 = vrot.slane %v1630, 1
        %v1632 = vmax.f32 %v1630, %v1631
        %v1633 = vsel %vm1529, %v1612, -inf
        %v1634 = vmax.f32 %v1611, %v1633
        %v1635 = vrot.slane %v1634, 4
        %v1636 = vmax.f32 %v1634, %v1635
        %v1637 = vrot.slane %v1636, 2
        %v1638 = vmax.f32 %v1636, %v1637
        %v1639 = vrot.slane %v1638, 1
        %v1640 = vmax.f32 %v1638, %v1639
        %v1641 = vsel %vm1529, %v1614, -inf
        %v1642 = vmax.f32 %v1613, %v1641
        %v1643 = vrot.slane %v1642, 4
        %v1644 = vmax.f32 %v1642, %v1643
        %v1645 = vrot.slane %v1644, 2
        %v1646 = vmax.f32 %v1644, %v1645
        %v1647 = vrot.slane %v1646, 1
        %v1648 = vmax.f32 %v1646, %v1647
        %v1649 = vsel %vm1529, %v1616, -inf
        %v1650 = vmax.f32 %v1615, %v1649
        %v1651 = vrot.slane %v1650, 4
        %v1652 = vmax.f32 %v1650, %v1651
        %v1653 = vrot.slane %v1652, 2
        %v1654 = vmax.f32 %v1652, %v1653
        %v1655 = vrot.slane %v1654, 1
        %v1656 = vmax.f32 %v1654, %v1655
        %v1657 = vsel %vm1529, %v1618, -inf
        %v1658 = vmax.f32 %v1617, %v1657
        %v1659 = vrot.slane %v1658, 4
        %v1660 = vmax.f32 %v1658, %v1659
        %v1661 = vrot.slane %v1660, 2
        %v1662 = vmax.f32 %v1660, %v1661
        %v1663 = vrot.slane %v1662, 1
        %v1664 = vmax.f32 %v1662, %v1663
        %v1665 = vsel %vm1529, %v1620, -inf
        %v1666 = vmax.f32 %v1619, %v1665
        %v1667 = vrot.slane %v1666, 4
        %v1668 = vmax.f32 %v1666, %v1667
        %v1669 = vrot.slane %v1668, 2
        %v1670 = vmax.f32 %v1668, %v1669
        %v1671 = vrot.slane %v1670, 1
        %v1672 = vmax.f32 %v1670, %v1671
        %v1673 = vsel %vm1529, %v1622, -inf
        %v1674 = vmax.f32 %v1621, %v1673
        %v1675 = vrot.slane %v1674, 4
        %v1676 = vmax.f32 %v1674, %v1675
        %v1677 = vrot.slane %v1676, 2
        %v1678 = vmax.f32 %v1676, %v1677
        %v1679 = vrot.slane %v1678, 1
        %v1680 = vmax.f32 %v1678, %v1679
        %v1681 = vsel %vm1529, %v1624, -inf
        %v1682 = vmax.f32 %v1623, %v1681
        %v1683 = vrot.slane %v1682, 4
        %v1684 = vmax.f32 %v1682, %v1683
        %v1685 = vrot.slane %v1684, 2
        %v1686 = vmax.f32 %v1684, %v1685
        %v1687 = vrot.slane %v1686, 1
        %v1688 = vmax.f32 %v1686, %v1687
        %v1697 = vsel %vm999, %v1640, %v1632
        %v1698 = vsel %vm1001, %v1648, %v1697
        %v1699 = vsel %vm1003, %v1656, %v1698
        %v1700 = vsel %vm1005, %v1664, %v1699
        %v1701 = vsel %vm1007, %v1672, %v1700
        %v1702 = vsel %vm1009, %v1680, %v1701
        %v1703 = vsel %vm1011, %v1688, %v1702
        %1705 = vst [vmem:[%s341 + $0x8] sm:$0xff] %v1703
        %v1706 = vld [vmem:[#allocation8] sm:$0xff]
        %v1707 = vld [vmem:[#allocation8 + $0x8] sm:$0xff]
        %v1708 = vld [vmem:[#allocation8 + $0x10] sm:$0xff]
        %v1709 = vld [vmem:[#allocation8 + $0x18] sm:$0xff]
        %v1710 = vld [vmem:[#allocation8 + $0x20] sm:$0xff]
        %v1711 = vld [vmem:[#allocation8 + $0x28] sm:$0xff]
        %v1712 = vld [vmem:[#allocation8 + $0x30] sm:$0xff]
        %v1713 = vld [vmem:[#allocation8 + $0x38] sm:$0xff]
        %v1714 = vld [vmem:[#allocation8 + $0x40] sm:$0xff]
        %v1715 = vld [vmem:[#allocation8 + $0x48] sm:$0xff]
        %v1716 = vld [vmem:[#allocation8 + $0x50] sm:$0xff]
        %v1717 = vld [vmem:[#allocation8 + $0x58] sm:$0xff]
        %v1718 = vld [vmem:[#allocation8 + $0x60] sm:$0xff]
        %v1719 = vld [vmem:[#allocation8 + $0x68] sm:$0xff]
        %v1720 = vld [vmem:[#allocation8 + $0x70] sm:$0xff]
        %v1721 = vld [vmem:[#allocation8 + $0x78] sm:$0xff]
        %v1722 = vld [vmem:[#allocation8 + $0x80] sm:$0xff]
        %v1723 = vld [vmem:[#allocation8 + $0x88] sm:$0xff]
        %v1724 = vld [vmem:[#allocation8 + $0x90] sm:$0xff]
        %v1725 = vld [vmem:[#allocation8 + $0x98] sm:$0xff]
        %1726 = vmatprep.subr.mxu0 %v1707
        %1727 = vmatpush1.msra.mxu0 %v1706
        %1728 = vmatprep.subr.mxu0 %v1712
        %1729 = vmatpush1.msra.mxu0 %v1711
        %1730 = vmatprep.subr.mxu0 %v1717
        %1731 = vmatpush1.msra.mxu0 %v1716
        %1732 = vmatprep.subr.mxu0 %v1722
        %1733 = vmatpush1.msra.mxu0 %v1721
        %1734 = vmatprep.subr.mxu0 0.0
        %1735 = vmatpush1.msra.mxu0 0.0
        %1736 = vmatprep.subr.mxu0 0.0
        %1737 = vmatpush1.msra.mxu0 0.0
        %1738 = vmatprep.subr.mxu0 0.0
        %1739 = vmatpush1.msra.mxu0 0.0
        %1740 = vmatprep.subr.mxu0 0.0
        %1741 = vmatpush1.msra.mxu0 0.0
        %1742 = vmatprep.subr.mxu0 0.0
        %1743 = vmatpush1.msra.mxu0 0.0
        %1744 = vmatprep.subr.mxu0 0.0
        %1745 = vmatpush1.msra.mxu0 0.0
        %1746 = vmatprep.subr.mxu0 0.0
        %1747 = vmatpush1.msra.mxu0 0.0
        %1748 = vmatprep.subr.mxu0 0.0
        %1749 = vmatpush1.msra.mxu0 0.0
        %1750 = vmatprep.subr.mxu0 0.0
        %1751 = vmatpush1.msra.mxu0 0.0
        %1752 = vmatprep.subr.mxu0 0.0
        %1753 = vmatpush1.msra.mxu0 0.0
        %1754 = vmatprep.subr.mxu0 0.0
        %1755 = vmatpush1.msra.mxu0 0.0
        %1756 = vmatprep.subr.mxu0 0.0
        %1757 = vmatpush1.msra.mxu0 0.0
        %1758 = vmatprep.subr.mxu0 0.0
        %1759 = vmatpush1.msra.mxu0 0.0
        %1760 = vmatprep.subr.mxu0 0.0
        %1761 = vmatpush1.msra.mxu0 0.0
        %1762 = vmatprep.subr.mxu0 0.0
        %1763 = vmatpush1.msra.mxu0 0.0
        %1764 = vmatprep.subr.mxu0 0.0
        %1765 = vmatpush1.msra.mxu0 0.0
        %1766 = vmatprep.subr.mxu0 0.0
        %1767 = vmatpush1.msra.mxu0 0.0
        %1768 = vmatprep.subr.mxu0 0.0
        %1769 = vmatpush1.msra.mxu0 0.0
        %1770 = vmatprep.subr.mxu0 0.0
        %1771 = vmatpush1.msra.mxu0 0.0
        %1772 = vmatprep.subr.mxu0 0.0
        %1773 = vmatpush1.msra.mxu0 0.0
        %1774 = vmatprep.subr.mxu0 0.0
        %1775 = vmatpush1.msra.mxu0 0.0
        %1776 = vmatprep.subr.mxu0 0.0
        %1777 = vmatpush1.msra.mxu0 0.0
        %1778 = vmatprep.subr.mxu0 0.0
        %1779 = vmatpush1.msra.mxu0 0.0
        %1780 = vmatprep.subr.mxu0 0.0
        %1781 = vmatpush1.msra.mxu0 0.0
        %1782 = vmatprep.subr.mxu0 0.0
        %1783 = vmatpush1.msra.mxu0 0.0
        %1784 = vmatprep.subr.mxu0 0.0
        %1785 = vmatpush1.msra.mxu0 0.0
        %1786 = vmatprep.subr.mxu0 0.0
        %1787 = vmatpush1.msra.mxu0 0.0
        %1788 = vmatprep.subr.mxu0 0.0
        %1789 = vmatpush1.msra.mxu0 0.0
        %1790 = vmatprep.mubr.f32.mxu0 0.0
        %1791 = vmatmul.mubr.f32.gmra.mrb[0].mxu0 %v373
        %v1792 = vpop.f32.mrb[0].mxu0
        %v1793 = vadd.f32 0.0, %v1792
        %v1794 = vpop.f32.mrb[0].mxu0
        %v1795 = vadd.f32 0.0, %v1794
        %1796 = vmatprep.mubr.f32.mxu0 0.0
        %1797 = vmatmul.mubr.f32.gmra.mrb[0].mxu0 %v376
        %v1798 = vpop.f32.mrb[0].mxu0
        %v1799 = vadd.f32 0.0, %v1798
        %v1800 = vpop.f32.mrb[0].mxu0
        %v1801 = vadd.f32 0.0, %v1800
        %1802 = vmatprep.mubr.f32.mxu0 0.0
        %1803 = vmatmul.mubr.f32.gmra.mrb[0].mxu0 %v379
        %v1804 = vpop.f32.mrb[0].mxu0
        %v1805 = vadd.f32 0.0, %v1804
        %v1806 = vpop.f32.mrb[0].mxu0
        %v1807 = vadd.f32 0.0, %v1806
        %1808 = vmatprep.mubr.f32.mxu0 0.0
        %1809 = vmatmul.mubr.f32.gmra.mrb[0].mxu0 %v382
        %v1810 = vpop.f32.mrb[0].mxu0
        %v1811 = vadd.f32 0.0, %v1810
        %v1812 = vpop.f32.mrb[0].mxu0
        %v1813 = vadd.f32 0.0, %v1812
        %1814 = vmatprep.mubr.f32.mxu0 0.0
        %1815 = vmatmul.mubr.f32.gmra.mrb[0].mxu0 %v385
        %v1816 = vpop.f32.mrb[0].mxu0
        %v1817 = vadd.f32 0.0, %v1816
        %v1818 = vpop.f32.mrb[0].mxu0
        %v1819 = vadd.f32 0.0, %v1818
        %1820 = vmatprep.mubr.f32.mxu0 0.0
        %1821 = vmatmul.mubr.f32.gmra.mrb[0].mxu0 %v388
        %v1822 = vpop.f32.mrb[0].mxu0
        %v1823 = vadd.f32 0.0, %v1822
        %v1824 = vpop.f32.mrb[0].mxu0
        %v1825 = vadd.f32 0.0, %v1824
        %1826 = vmatprep.mubr.f32.mxu0 0.0
        %1827 = vmatmul.mubr.f32.gmra.mrb[0].mxu0 %v391
        %v1828 = vpop.f32.mrb[0].mxu0
        %v1829 = vadd.f32 0.0, %v1828
        %v1830 = vpop.f32.mrb[0].mxu0
        %v1831 = vadd.f32 0.0, %v1830
        %1832 = vmatprep.mubr.f32.mxu0 0.0
        %1833 = vmatmul.mubr.f32.gmra.mrb[0].mxu0 %v394
        %v1834 = vpop.f32.mrb[0].mxu0
        %v1835 = vadd.f32 0.0, %v1834
        %v1836 = vpop.f32.mrb[0].mxu0
        %v1837 = vadd.f32 0.0, %v1836
        %1838 = vmatprep.mubr.f32.mxu0 0.0
        %1839 = vmatmul.mubr.f32.gmra.mrb[0].mxu0 %v397
        %v1840 = vpop.f32.mrb[0].mxu0
        %v1841 = vadd.f32 0.0, %v1840
        %v1842 = vpop.f32.mrb[0].mxu0
        %v1843 = vadd.f32 0.0, %v1842
        %1844 = vmatprep.mubr.f32.mxu0 0.0
        %1845 = vmatmul.mubr.f32.gmra.mrb[0].mxu0 %v400
        %v1846 = vpop.f32.mrb[0].mxu0
        %v1847 = vadd.f32 0.0, %v1846
        %v1848 = vpop.f32.mrb[0].mxu0
        %v1849 = vadd.f32 0.0, %v1848
        %1850 = vmatprep.mubr.f32.mxu0 0.0
        %1851 = vmatmul.mubr.f32.gmra.mrb[0].mxu0 %v403
        %v1852 = vpop.f32.mrb[0].mxu0
        %v1853 = vadd.f32 0.0, %v1852
        %v1854 = vpop.f32.mrb[0].mxu0
        %v1855 = vadd.f32 0.0, %v1854
        %1856 = vmatprep.mubr.f32.mxu0 0.0
        %1857 = vmatmul.mubr.f32.gmra.mrb[0].mxu0 %v406
        %v1858 = vpop.f32.mrb[0].mxu0
        %v1859 = vadd.f32 0.0, %v1858
        %v1860 = vpop.f32.mrb[0].mxu0
        %v1861 = vadd.f32 0.0, %v1860
        %1862 = vmatprep.mubr.f32.mxu0 0.0
        %1863 = vmatmul.mubr.f32.gmra.mrb[0].mxu0 %v409
        %v1864 = vpop.f32.mrb[0].mxu0
        %v1865 = vadd.f32 0.0, %v1864
        %v1866 = vpop.f32.mrb[0].mxu0
        %v1867 = vadd.f32 0.0, %v1866
        %1868 = vmatprep.mubr.f32.mxu0 0.0
        %1869 = vmatmul.mubr.f32.gmra.mrb[0].mxu0 %v412
        %v1870 = vpop.f32.mrb[0].mxu0
        %v1871 = vadd.f32 0.0, %v1870
        %v1872 = vpop.f32.mrb[0].mxu0
        %v1873 = vadd.f32 0.0, %v1872
        %1874 = vmatprep.mubr.f32.mxu0 0.0
        %1875 = vmatmul.mubr.f32.gmra.mrb[0].mxu0 %v415
        %v1876 = vpop.f32.mrb[0].mxu0
        %v1877 = vadd.f32 0.0, %v1876
        %v1878 = vpop.f32.mrb[0].mxu0
        %v1879 = vadd.f32 0.0, %v1878
        %1880 = vmatprep.mubr.f32.mxu0 0.0
        %1881 = vmatmul.mubr.f32.gmra.mrb[0].mxu0 %v418
        %v1882 = vpop.f32.mrb[0].mxu0
        %v1883 = vadd.f32 0.0, %v1882
        %v1884 = vpop.f32.mrb[0].mxu0
        %v1885 = vadd.f32 0.0, %v1884
        %1886 = vdwg.mxu0
        %1887 = vmatprep.subr.mxu0 %v1709
        %1888 = vmatpush1.msra.mxu0 %v1708
        %1889 = vmatprep.subr.mxu0 %v1714
        %1890 = vmatpush1.msra.mxu0 %v1713
        %1891 = vmatprep.subr.mxu0 %v1719
        %1892 = vmatpush1.msra.mxu0 %v1718
        %1893 = vmatprep.subr.mxu0 %v1724
        %1894 = vmatpush1.msra.mxu0 %v1723
        %1895 = vmatprep.subr.mxu0 0.0
        %1896 = vmatpush1.msra.mxu0 0.0
        %1897 = vmatprep.subr.mxu0 0.0
        %1898 = vmatpush1.msra.mxu0 0.0
        %1899 = vmatprep.subr.mxu0 0.0
        %1900 = vmatpush1.msra.mxu0 0.0
        %1901 = vmatprep.subr.mxu0 0.0
        %1902 = vmatpush1.msra.mxu0 0.0
        %1903 = vmatprep.subr.mxu0 0.0
        %1904 = vmatpush1.msra.mxu0 0.0
        %1905 = vmatprep.subr.mxu0 0.0
        %1906 = vmatpush1.msra.mxu0 0.0
        %1907 = vmatprep.subr.mxu0 0.0
        %1908 = vmatpush1.msra.mxu0 0.0
        %1909 = vmatprep.subr.mxu0 0.0
        %1910 = vmatpush1.msra.mxu0 0.0
        %1911 = vmatprep.subr.mxu0 0.0
        %1912 = vmatpush1.msra.mxu0 0.0
        %1913 = vmatprep.subr.mxu0 0.0
        %1914 = vmatpush1.msra.mxu0 0.0
        %1915 = vmatprep.subr.mxu0 0.0
        %1916 = vmatpush1.msra.mxu0 0.0
        %1917 = vmatprep.subr.mxu0 0.0
        %1918 = vmatpush1.msra.mxu0 0.0
        %1919 = vmatprep.subr.mxu0 0.0
        %1920 = vmatpush1.msra.mxu0 0.0
        %1921 = vmatprep.subr.mxu0 0.0
        %1922 = vmatpush1.msra.mxu0 0.0
        %1923 = vmatprep.subr.mxu0 0.0
        %1924 = vmatpush1.msra.mxu0 0.0
        %1925 = vmatprep.subr.mxu0 0.0
        %1926 = vmatpush1.msra.mxu0 0.0
        %1927 = vmatprep.subr.mxu0 0.0
        %1928 = vmatpush1.msra.mxu0 0.0
        %1929 = vmatprep.subr.mxu0 0.0
        %1930 = vmatpush1.msra.mxu0 0.0
        %1931 = vmatprep.subr.mxu0 0.0
        %1932 = vmatpush1.msra.mxu0 0.0
        %1933 = vmatprep.subr.mxu0 0.0
        %1934 = vmatpush1.msra.mxu0 0.0
        %1935 = vmatprep.subr.mxu0 0.0
        %1936 = vmatpush1.msra.mxu0 0.0
        %1937 = vmatprep.subr.mxu0 0.0
        %1938 = vmatpush1.msra.mxu0 0.0
        %1939 = vmatprep.subr.mxu0 0.0
        %1940 = vmatpush1.msra.mxu0 0.0
        %1941 = vmatprep.subr.mxu0 0.0
        %1942 = vmatpush1.msra.mxu0 0.0
        %1943 = vmatprep.subr.mxu0 0.0
        %1944 = vmatpush1.msra.mxu0 0.0
        %1945 = vmatprep.subr.mxu0 0.0
        %1946 = vmatpush1.msra.mxu0 0.0
        %1947 = vmatprep.subr.mxu0 0.0
        %1948 = vmatpush1.msra.mxu0 0.0
        %1949 = vmatprep.subr.mxu0 0.0
        %1950 = vmatpush1.msra.mxu0 0.0
        %1951 = vmatprep.mubr.f32.mxu0 0.0
        %1952 = vmatmul.mubr.f32.gmra.mrb[0].mxu0 %v373
        %v1953 = vpop.f32.mrb[0].mxu0
        %v1954 = vadd.f32 0.0, %v1953
        %v1955 = vpop.f32.mrb[0].mxu0
        %v1956 = vadd.f32 0.0, %v1955
        %1957 = vmatprep.mubr.f32.mxu0 0.0
        %1958 = vmatmul.mubr.f32.gmra.mrb[0].mxu0 %v376
        %v1959 = vpop.f32.mrb[0].mxu0
        %v1960 = vadd.f32 0.0, %v1959
        %v1961 = vpop.f32.mrb[0].mxu0
        %v1962 = vadd.f32 0.0, %v1961
        %1963 = vmatprep.mubr.f32.mxu0 0.0
        %1964 = vmatmul.mubr.f32.gmra.mrb[0].mxu0 %v379
        %v1965 = vpop.f32.mrb[0].mxu0
        %v1966 = vadd.f32 0.0, %v1965
        %v1967 = vpop.f32.mrb[0].mxu0
        %v1968 = vadd.f32 0.0, %v1967
        %1969 = vmatprep.mubr.f32.mxu0 0.0
        %1970 = vmatmul.mubr.f32.gmra.mrb[0].mxu0 %v382
        %v1971 = vpop.f32.mrb[0].mxu0
        %v1972 = vadd.f32 0.0, %v1971
        %v1973 = vpop.f32.mrb[0].mxu0
        %v1974 = vadd.f32 0.0, %v1973
        %1975 = vmatprep.mubr.f32.mxu0 0.0
        %1976 = vmatmul.mubr.f32.gmra.mrb[0].mxu0 %v385
        %v1977 = vpop.f32.mrb[0].mxu0
        %v1978 = vadd.f32 0.0, %v1977
        %v1979 = vpop.f32.mrb[0].mxu0
        %v1980 = vadd.f32 0.0, %v1979
        %1981 = vmatprep.mubr.f32.mxu0 0.0
        %1982 = vmatmul.mubr.f32.gmra.mrb[0].mxu0 %v388
        %v1983 = vpop.f32.mrb[0].mxu0
        %v1984 = vadd.f32 0.0, %v1983
        %v1985 = vpop.f32.mrb[0].mxu0
        %v1986 = vadd.f32 0.0, %v1985
        %1987 = vmatprep.mubr.f32.mxu0 0.0
        %1988 = vmatmul.mubr.f32.gmra.mrb[0].mxu0 %v391
        %v1989 = vpop.f32.mrb[0].mxu0
        %v1990 = vadd.f32 0.0, %v1989
        %v1991 = vpop.f32.mrb[0].mxu0
        %v1992 = vadd.f32 0.0, %v1991
        %1993 = vmatprep.mubr.f32.mxu0 0.0
        %1994 = vmatmul.mubr.f32.gmra.mrb[0].mxu0 %v394
        %v1995 = vpop.f32.mrb[0].mxu0
        %v1996 = vadd.f32 0.0, %v1995
        %v1997 = vpop.f32.mrb[0].mxu0
        %v1998 = vadd.f32 0.0, %v1997
        %1999 = vmatprep.mubr.f32.mxu0 0.0
        %2000 = vmatmul.mubr.f32.gmra.mrb[0].mxu0 %v397
        %v2001 = vpop.f32.mrb[0].mxu0
        %v2002 = vadd.f32 0.0, %v2001
        %v2003 = vpop.f32.mrb[0].mxu0
        %v2004 = vadd.f32 0.0, %v2003
        %2005 = vmatprep.mubr.f32.mxu0 0.0
        %2006 = vmatmul.mubr.f32.gmra.mrb[0].mxu0 %v400
        %v2007 = vpop.f32.mrb[0].mxu0
        %v2008 = vadd.f32 0.0, %v2007
        %v2009 = vpop.f32.mrb[0].mxu0
        %v2010 = vadd.f32 0.0, %v2009
        %2011 = vmatprep.mubr.f32.mxu0 0.0
        %2012 = vmatmul.mubr.f32.gmra.mrb[0].mxu0 %v403
        %v2013 = vpop.f32.mrb[0].mxu0
        %v2014 = vadd.f32 0.0, %v2013
        %v2015 = vpop.f32.mrb[0].mxu0
        %v2016 = vadd.f32 0.0, %v2015
        %2017 = vmatprep.mubr.f32.mxu0 0.0
        %2018 = vmatmul.mubr.f32.gmra.mrb[0].mxu0 %v406
        %v2019 = vpop.f32.mrb[0].mxu0
        %v2020 = vadd.f32 0.0, %v2019
        %v2021 = vpop.f32.mrb[0].mxu0
        %v2022 = vadd.f32 0.0, %v2021
        %2023 = vmatprep.mubr.f32.mxu0 0.0
        %2024 = vmatmul.mubr.f32.gmra.mrb[0].mxu0 %v409
        %v2025 = vpop.f32.mrb[0].mxu0
        %v2026 = vadd.f32 0.0, %v2025
        %v2027 = vpop.f32.mrb[0].mxu0
        %v2028 = vadd.f32 0.0, %v2027
        %2029 = vmatprep.mubr.f32.mxu0 0.0
        %2030 = vmatmul.mubr.f32.gmra.mrb[0].mxu0 %v412
        %v2031 = vpop.f32.mrb[0].mxu0
        %v2032 = vadd.f32 0.0, %v2031
        %v2033 = vpop.f32.mrb[0].mxu0
        %v2034 = vadd.f32 0.0, %v2033
        %2035 = vmatprep.mubr.f32.mxu0 0.0
        %2036 = vmatmul.mubr.f32.gmra.mrb[0].mxu0 %v415
        %v2037 = vpop.f32.mrb[0].mxu0
        %v2038 = vadd.f32 0.0, %v2037
        %v2039 = vpop.f32.mrb[0].mxu0
        %v2040 = vadd.f32 0.0, %v2039
        %2041 = vmatprep.mubr.f32.mxu0 0.0
        %2042 = vmatmul.mubr.f32.gmra.mrb[0].mxu0 %v418
        %v2043 = vpop.f32.mrb[0].mxu0
        %v2044 = vadd.f32 0.0, %v2043
        %v2045 = vpop.f32.mrb[0].mxu0
        %v2046 = vadd.f32 0.0, %v2045
        %2047 = vdwg.mxu0
        %2048 = vmatprep.subr.mxu0 0.0
        %2049 = vmatpush1.msra.mxu0 %v1710
        %2050 = vmatprep.subr.mxu0 0.0
        %2051 = vmatpush1.msra.mxu0 %v1715
        %2052 = vmatprep.subr.mxu0 0.0
        %2053 = vmatpush1.msra.mxu0 %v1720
        %2054 = vmatprep.subr.mxu0 0.0
        %2055 = vmatpush1.msra.mxu0 %v1725
        %2056 = vmatprep.subr.mxu0 0.0
        %2057 = vmatpush1.msra.mxu0 0.0
        %2058 = vmatprep.subr.mxu0 0.0
        %2059 = vmatpush1.msra.mxu0 0.0
        %2060 = vmatprep.subr.mxu0 0.0
        %2061 = vmatpush1.msra.mxu0 0.0
        %2062 = vmatprep.subr.mxu0 0.0
        %2063 = vmatpush1.msra.mxu0 0.0
        %2064 = vmatprep.subr.mxu0 0.0
        %2065 = vmatpush1.msra.mxu0 0.0
        %2066 = vmatprep.subr.mxu0 0.0
        %2067 = vmatpush1.msra.mxu0 0.0
        %2068 = vmatprep.subr.mxu0 0.0
        %2069 = vmatpush1.msra.mxu0 0.0
        %2070 = vmatprep.subr.mxu0 0.0
        %2071 = vmatpush1.msra.mxu0 0.0
        %2072 = vmatprep.subr.mxu0 0.0
        %2073 = vmatpush1.msra.mxu0 0.0
        %2074 = vmatprep.subr.mxu0 0.0
        %2075 = vmatpush1.msra.mxu0 0.0
        %2076 = vmatprep.subr.mxu0 0.0
        %2077 = vmatpush1.msra.mxu0 0.0
        %2078 = vmatprep.subr.mxu0 0.0
        %2079 = vmatpush1.msra.mxu0 0.0
        %2080 = vmatprep.subr.mxu0 0.0
        %2081 = vmatpush1.msra.mxu0 0.0
        %2082 = vmatprep.subr.mxu0 0.0
        %2083 = vmatpush1.msra.mxu0 0.0
        %2084 = vmatprep.subr.mxu0 0.0
        %2085 = vmatpush1.msra.mxu0 0.0
        %2086 = vmatprep.subr.mxu0 0.0
        %2087 = vmatpush1.msra.mxu0 0.0
        %2088 = vmatprep.subr.mxu0 0.0
        %2089 = vmatpush1.msra.mxu0 0.0
        %2090 = vmatprep.subr.mxu0 0.0
        %2091 = vmatpush1.msra.mxu0 0.0
        %2092 = vmatprep.subr.mxu0 0.0
        %2093 = vmatpush1.msra.mxu0 0.0
        %2094 = vmatprep.subr.mxu0 0.0
        %2095 = vmatpush1.msra.mxu0 0.0
        %2096 = vmatprep.subr.mxu0 0.0
        %2097 = vmatpush1.msra.mxu0 0.0
        %2098 = vmatprep.subr.mxu0 0.0
        %2099 = vmatpush1.msra.mxu0 0.0
        %2100 = vmatprep.subr.mxu0 0.0
        %2101 = vmatpush1.msra.mxu0 0.0
        %2102 = vmatprep.subr.mxu0 0.0
        %2103 = vmatpush1.msra.mxu0 0.0
        %2104 = vmatprep.subr.mxu0 0.0
        %2105 = vmatpush1.msra.mxu0 0.0
        %2106 = vmatprep.subr.mxu0 0.0
        %2107 = vmatpush1.msra.mxu0 0.0
        %2108 = vmatprep.subr.mxu0 0.0
        %2109 = vmatpush1.msra.mxu0 0.0
        %2110 = vmatprep.subr.mxu0 0.0
        %2111 = vmatpush1.msra.mxu0 0.0
        %2112 = vmatprep.mubr.f32.mxu0 0.0
        %2113 = vmatmul.mubr.f32.gmra.mrb[0].mxu0 %v373
        %v2114 = vpop.f32.mrb[0].mxu0
        %v2115 = vadd.f32 0.0, %v2114
        %v2116 = vpop.f32.mrb[0].mxu0
        %2117 = vmatprep.mubr.f32.mxu0 0.0
        %2118 = vmatmul.mubr.f32.gmra.mrb[0].mxu0 %v376
        %v2119 = vpop.f32.mrb[0].mxu0
        %v2120 = vadd.f32 0.0, %v2119
        %v2121 = vpop.f32.mrb[0].mxu0
        %2122 = vmatprep.mubr.f32.mxu0 0.0
        %2123 = vmatmul.mubr.f32.gmra.mrb[0].mxu0 %v379
        %v2124 = vpop.f32.mrb[0].mxu0
        %v2125 = vadd.f32 0.0, %v2124
        %v2126 = vpop.f32.mrb[0].mxu0
        %2127 = vmatprep.mubr.f32.mxu0 0.0
        %2128 = vmatmul.mubr.f32.gmra.mrb[0].mxu0 %v382
        %v2129 = vpop.f32.mrb[0].mxu0
        %v2130 = vadd.f32 0.0, %v2129
        %v2131 = vpop.f32.mrb[0].mxu0
        %2132 = vmatprep.mubr.f32.mxu0 0.0
        %2133 = vmatmul.mubr.f32.gmra.mrb[0].mxu0 %v385
        %v2134 = vpop.f32.mrb[0].mxu0
        %v2135 = vadd.f32 0.0, %v2134
        %v2136 = vpop.f32.mrb[0].mxu0
        %2137 = vmatprep.mubr.f32.mxu0 0.0
        %2138 = vmatmul.mubr.f32.gmra.mrb[0].mxu0 %v388
        %v2139 = vpop.f32.mrb[0].mxu0
        %v2140 = vadd.f32 0.0, %v2139
        %v2141 = vpop.f32.mrb[0].mxu0
        %2142 = vmatprep.mubr.f32.mxu0 0.0
        %2143 = vmatmul.mubr.f32.gmra.mrb[0].mxu0 %v391
        %v2144 = vpop.f32.mrb[0].mxu0
        %v2145 = vadd.f32 0.0, %v2144
        %v2146 = vpop.f32.mrb[0].mxu0
        %2147 = vmatprep.mubr.f32.mxu0 0.0
        %2148 = vmatmul.mubr.f32.gmra.mrb[0].mxu0 %v394
        %v2149 = vpop.f32.mrb[0].mxu0
        %v2150 = vadd.f32 0.0, %v2149
        %v2151 = vpop.f32.mrb[0].mxu0
        %2152 = vmatprep.mubr.f32.mxu0 0.0
        %2153 = vmatmul.mubr.f32.gmra.mrb[0].mxu0 %v397
        %v2154 = vpop.f32.mrb[0].mxu0
        %v2155 = vadd.f32 0.0, %v2154
        %v2156 = vpop.f32.mrb[0].mxu0
        %2157 = vmatprep.mubr.f32.mxu0 0.0
        %2158 = vmatmul.mubr.f32.gmra.mrb[0].mxu0 %v400
        %v2159 = vpop.f32.mrb[0].mxu0
        %v2160 = vadd.f32 0.0, %v2159
        %v2161 = vpop.f32.mrb[0].mxu0
        %2162 = vmatprep.mubr.f32.mxu0 0.0
        %2163 = vmatmul.mubr.f32.gmra.mrb[0].mxu0 %v403
        %v2164 = vpop.f32.mrb[0].mxu0
        %v2165 = vadd.f32 0.0, %v2164
        %v2166 = vpop.f32.mrb[0].mxu0
        %2167 = vmatprep.mubr.f32.mxu0 0.0
        %2168 = vmatmul.mubr.f32.gmra.mrb[0].mxu0 %v406
        %v2169 = vpop.f32.mrb[0].mxu0
        %v2170 = vadd.f32 0.0, %v2169
        %v2171 = vpop.f32.mrb[0].mxu0
        %2172 = vmatprep.mubr.f32.mxu0 0.0
        %2173 = vmatmul.mubr.f32.gmra.mrb[0].mxu0 %v409
        %v2174 = vpop.f32.mrb[0].mxu0
        %v2175 = vadd.f32 0.0, %v2174
        %v2176 = vpop.f32.mrb[0].mxu0
        %2177 = vmatprep.mubr.f32.mxu0 0.0
        %2178 = vmatmul.mubr.f32.gmra.mrb[0].mxu0 %v412
        %v2179 = vpop.f32.mrb[0].mxu0
        %v2180 = vadd.f32 0.0, %v2179
        %v2181 = vpop.f32.mrb[0].mxu0
        %2182 = vmatprep.mubr.f32.mxu0 0.0
        %2183 = vmatmul.mubr.f32.gmra.mrb[0].mxu0 %v415
        %v2184 = vpop.f32.mrb[0].mxu0
        %v2185 = vadd.f32 0.0, %v2184
        %v2186 = vpop.f32.mrb[0].mxu0
        %2187 = vmatprep.mubr.f32.mxu0 0.0
        %2188 = vmatmul.mubr.f32.gmra.mrb[0].mxu0 %v418
        %v2189 = vpop.f32.mrb[0].mxu0
        %v2190 = vadd.f32 0.0, %v2189
        %v2191 = vpop.f32.mrb[0].mxu0
        %2192 = vdwg.mxu0
        %v2193 = vadd.f32 %v1793, 0.0
        %v2194 = vadd.f32 %v1799, 0.0
        %v2195 = vadd.f32 %v1805, 0.0
        %v2196 = vadd.f32 %v1811, 0.0
        %v2197 = vadd.f32 %v1817, 0.0
        %v2198 = vadd.f32 %v1823, 0.0
        %v2199 = vadd.f32 %v1829, 0.0
        %v2200 = vadd.f32 %v1835, 0.0
        %v2201 = vadd.f32 %v1841, 0.0
        %v2202 = vadd.f32 %v1847, 0.0
        %v2203 = vadd.f32 %v1853, 0.0
        %v2204 = vadd.f32 %v1859, 0.0
        %v2205 = vadd.f32 %v1865, 0.0
        %v2206 = vadd.f32 %v1871, 0.0
        %v2207 = vadd.f32 %v1877, 0.0
        %v2208 = vadd.f32 %v1883, 0.0
        %v2225 = vrot.slane %v1795, 1
        %v2226 = vrot.slane %v1801, 1
        %v2227 = vsel %vm758, %v2225, %v2226
        %v2228 = vrot.slane %v1807, 1
        %v2229 = vrot.slane %v1813, 1
        %v2230 = vsel %vm758, %v2228, %v2229
        %v2231 = vrot.slane %v1819, 1
        %v2232 = vrot.slane %v1825, 1
        %v2233 = vsel %vm758, %v2231, %v2232
        %v2234 = vrot.slane %v1831, 1
        %v2235 = vrot.slane %v1837, 1
        %v2236 = vsel %vm758, %v2234, %v2235
        %v2237 = vrot.slane %v1843, 1
        %v2238 = vrot.slane %v1849, 1
        %v2239 = vsel %vm758, %v2237, %v2238
        %v2240 = vrot.slane %v1855, 1
        %v2241 = vrot.slane %v1861, 1
        %v2242 = vsel %vm758, %v2240, %v2241
        %v2243 = vrot.slane %v1867, 1
        %v2244 = vrot.slane %v1873, 1
        %v2245 = vsel %vm758, %v2243, %v2244
        %v2246 = vrot.slane %v1879, 1
        %v2247 = vrot.slane %v1885, 1
        %v2248 = vsel %vm758, %v2246, %v2247
        %v2265 = vadd.f32 %v2193, %v2227
        %v2266 = vadd.f32 %v2194, %v2226
        %v2267 = vadd.f32 %v2195, %v2230
        %v2268 = vadd.f32 %v2196, %v2229
        %v2269 = vadd.f32 %v2197, %v2233
        %v2270 = vadd.f32 %v2198, %v2232
        %v2271 = vadd.f32 %v2199, %v2236
        %v2272 = vadd.f32 %v2200, %v2235
        %v2273 = vadd.f32 %v2201, %v2239
        %v2274 = vadd.f32 %v2202, %v2238
        %v2275 = vadd.f32 %v2203, %v2242
        %v2276 = vadd.f32 %v2204, %v2241
        %v2277 = vadd.f32 %v2205, %v2245
        %v2278 = vadd.f32 %v2206, %v2244
        %v2279 = vadd.f32 %v2207, %v2248
        %v2280 = vadd.f32 %v2208, %v2247
        %v2297 = vrot.slane %v1954, 2
        %v2298 = vrot.slane %v1960, 2
        %v2299 = vsel %vm831, %v2297, %v2298
        %v2300 = vrot.slane %v1966, 2
        %v2301 = vrot.slane %v1972, 2
        %v2302 = vsel %vm831, %v2300, %v2301
        %v2303 = vrot.slane %v1978, 2
        %v2304 = vrot.slane %v1984, 2
        %v2305 = vsel %vm831, %v2303, %v2304
        %v2306 = vrot.slane %v1990, 2
        %v2307 = vrot.slane %v1996, 2
        %v2308 = vsel %vm831, %v2306, %v2307
        %v2309 = vrot.slane %v2002, 2
        %v2310 = vrot.slane %v2008, 2
        %v2311 = vsel %vm831, %v2309, %v2310
        %v2312 = vrot.slane %v2014, 2
        %v2313 = vrot.slane %v2020, 2
        %v2314 = vsel %vm831, %v2312, %v2313
        %v2315 = vrot.slane %v2026, 2
        %v2316 = vrot.slane %v2032, 2
        %v2317 = vsel %vm831, %v2315, %v2316
        %v2318 = vrot.slane %v2038, 2
        %v2319 = vrot.slane %v2044, 2
        %v2320 = vsel %vm831, %v2318, %v2319
        %v2337 = vadd.f32 %v2265, %v2299
        %v2338 = vadd.f32 %v2266, %v2298
        %v2339 = vadd.f32 %v2267, %v2302
        %v2340 = vadd.f32 %v2268, %v2301
        %v2341 = vadd.f32 %v2269, %v2305
        %v2342 = vadd.f32 %v2270, %v2304
        %v2343 = vadd.f32 %v2271, %v2308
        %v2344 = vadd.f32 %v2272, %v2307
        %v2345 = vadd.f32 %v2273, %v2311
        %v2346 = vadd.f32 %v2274, %v2310
        %v2347 = vadd.f32 %v2275, %v2314
        %v2348 = vadd.f32 %v2276, %v2313
        %v2349 = vadd.f32 %v2277, %v2317
        %v2350 = vadd.f32 %v2278, %v2316
        %v2351 = vadd.f32 %v2279, %v2320
        %v2352 = vadd.f32 %v2280, %v2319
        %v2369 = vrot.slane %v1956, 3
        %v2370 = vrot.slane %v1962, 3
        %v2371 = vsel %vm1529, %v2369, %v2370
        %v2372 = vrot.slane %v1968, 3
        %v2373 = vrot.slane %v1974, 3
        %v2374 = vsel %vm1529, %v2372, %v2373
        %v2375 = vrot.slane %v1980, 3
        %v2376 = vrot.slane %v1986, 3
        %v2377 = vsel %vm1529, %v2375, %v2376
        %v2378 = vrot.slane %v1992, 3
        %v2379 = vrot.slane %v1998, 3
        %v2380 = vsel %vm1529, %v2378, %v2379
        %v2381 = vrot.slane %v2004, 3
        %v2382 = vrot.slane %v2010, 3
        %v2383 = vsel %vm1529, %v2381, %v2382
        %v2384 = vrot.slane %v2016, 3
        %v2385 = vrot.slane %v2022, 3
        %v2386 = vsel %vm1529, %v2384, %v2385
        %v2387 = vrot.slane %v2028, 3
        %v2388 = vrot.slane %v2034, 3
        %v2389 = vsel %vm1529, %v2387, %v2388
        %v2390 = vrot.slane %v2040, 3
        %v2391 = vrot.slane %v2046, 3
        %v2392 = vsel %vm1529, %v2390, %v2391
        %v2409 = vadd.f32 %v2337, %v2371
        %v2410 = vadd.f32 %v2338, %v2370
        %v2411 = vadd.f32 %v2339, %v2374
        %v2412 = vadd.f32 %v2340, %v2373
        %v2413 = vadd.f32 %v2341, %v2377
        %v2414 = vadd.f32 %v2342, %v2376
        %v2415 = vadd.f32 %v2343, %v2380
        %v2416 = vadd.f32 %v2344, %v2379
        %v2417 = vadd.f32 %v2345, %v2383
        %v2418 = vadd.f32 %v2346, %v2382
        %v2419 = vadd.f32 %v2347, %v2386
        %v2420 = vadd.f32 %v2348, %v2385
        %v2421 = vadd.f32 %v2349, %v2389
        %v2422 = vadd.f32 %v2350, %v2388
        %v2423 = vadd.f32 %v2351, %v2392
        %v2424 = vadd.f32 %v2352, %v2391
        %vm2441 = vcmask 1043456
        %v2442 = vrot.slane %v2115, 4
        %v2443 = vrot.slane %v2120, 4
        %v2444 = vsel %vm2441, %v2442, %v2443
        %v2445 = vrot.slane %v2125, 4
        %v2446 = vrot.slane %v2130, 4
        %v2447 = vsel %vm2441, %v2445, %v2446
        %v2448 = vrot.slane %v2135, 4
        %v2449 = vrot.slane %v2140, 4
        %v2450 = vsel %vm2441, %v2448, %v2449
        %v2451 = vrot.slane %v2145, 4
        %v2452 = vrot.slane %v2150, 4
        %v2453 = vsel %vm2441, %v2451, %v2452
        %v2454 = vrot.slane %v2155, 4
        %v2455 = vrot.slane %v2160, 4
        %v2456 = vsel %vm2441, %v2454, %v2455
        %v2457 = vrot.slane %v2165, 4
        %v2458 = vrot.slane %v2170, 4
        %v2459 = vsel %vm2441, %v2457, %v2458
        %v2460 = vrot.slane %v2175, 4
        %v2461 = vrot.slane %v2180, 4
        %v2462 = vsel %vm2441, %v2460, %v2461
        %v2463 = vrot.slane %v2185, 4
        %v2464 = vrot.slane %v2190, 4
        %v2465 = vsel %vm2441, %v2463, %v2464
        %v2482 = vadd.f32 %v2409, %v2444
        %v2483 = vadd.f32 %v2410, %v2443
        %v2484 = vadd.f32 %v2411, %v2447
        %v2485 = vadd.f32 %v2412, %v2446
        %v2486 = vadd.f32 %v2413, %v2450
        %v2487 = vadd.f32 %v2414, %v2449
        %v2488 = vadd.f32 %v2415, %v2453
        %v2489 = vadd.f32 %v2416, %v2452
        %v2490 = vadd.f32 %v2417, %v2456
        %v2491 = vadd.f32 %v2418, %v2455
        %v2492 = vadd.f32 %v2419, %v2459
        %v2493 = vadd.f32 %v2420, %v2458
        %v2494 = vadd.f32 %v2421, %v2462
        %v2495 = vadd.f32 %v2422, %v2461
        %v2496 = vadd.f32 %v2423, %v2465
        %v2497 = vadd.f32 %v2424, %v2464
        %v2498 = vld [vmem:[%s6] sm:$0x1]
        %v2500 = vlaneseq
        %v2501 = vshrl.u32 %v2500, 7
        %v2502 = vsub.s32 0, %v2501
        %v2503 = vrot.slane %v2498, %v2502
        %v2505 = vadd.f32 %v2482, %v2503
        %v2506 = vadd.f32 %v2483, %v2503
        %v2507 = vadd.f32 %v2484, %v2503
        %v2508 = vadd.f32 %v2485, %v2503
        %v2509 = vadd.f32 %v2486, %v2503
        %v2510 = vadd.f32 %v2487, %v2503
        %v2511 = vadd.f32 %v2488, %v2503
        %v2512 = vadd.f32 %v2489, %v2503
        %v2513 = vadd.f32 %v2490, %v2503
        %v2514 = vadd.f32 %v2491, %v2503
        %v2515 = vadd.f32 %v2492, %v2503
        %v2516 = vadd.f32 %v2493, %v2503
        %v2517 = vadd.f32 %v2494, %v2503
        %v2518 = vadd.f32 %v2495, %v2503
        %v2519 = vadd.f32 %v2496, %v2503
        %v2520 = vadd.f32 %v2497, %v2503
        %v2521 = vmax.f32 %v2505, 0.0
        %v2522 = vmax.f32 %v2506, 0.0
        %v2523 = vmax.f32 %v2507, 0.0
        %v2524 = vmax.f32 %v2508, 0.0
        %v2525 = vmax.f32 %v2509, 0.0
        %v2526 = vmax.f32 %v2510, 0.0
        %v2527 = vmax.f32 %v2511, 0.0
        %v2528 = vmax.f32 %v2512, 0.0
        %v2529 = vmax.f32 %v2513, 0.0
        %v2530 = vmax.f32 %v2514, 0.0
        %v2531 = vmax.f32 %v2515, 0.0
        %v2532 = vmax.f32 %v2516, 0.0
        %v2533 = vmax.f32 %v2517, 0.0
        %v2534 = vmax.f32 %v2518, 0.0
        %v2535 = vmax.f32 %v2519, 0.0
        %v2536 = vmax.f32 %v2520, 0.0
        %v2537 = vsel %vm2441, %v2522, -inf
        %v2538 = vmax.f32 %v2521, %v2537
        %v2539 = vrot.slane %v2538, 4
        %v2540 = vmax.f32 %v2538, %v2539
        %v2541 = vrot.slane %v2540, 2
        %v2542 = vmax.f32 %v2540, %v2541
        %v2543 = vrot.slane %v2542, 1
        %v2544 = vmax.f32 %v2542, %v2543
        %v2545 = vsel %vm2441, %v2524, -inf
        %v2546 = vmax.f32 %v2523, %v2545
        %v2547 = vrot.slane %v2546, 4
        %v2548 = vmax.f32 %v2546, %v2547
        %v2549 = vrot.slane %v2548, 2
        %v2550 = vmax.f32 %v2548, %v2549
        %v2551 = vrot.slane %v2550, 1
        %v2552 = vmax.f32 %v2550, %v2551
        %v2553 = vsel %vm2441, %v2526, -inf
        %v2554 = vmax.f32 %v2525, %v2553
        %v2555 = vrot.slane %v2554, 4
        %v2556 = vmax.f32 %v2554, %v2555
        %v2557 = vrot.slane %v2556, 2
        %v2558 = vmax.f32 %v2556, %v2557
        %v2559 = vrot.slane %v2558, 1
        %v2560 = vmax.f32 %v2558, %v2559
        %v2561 = vsel %vm2441, %v2528, -inf
        %v2562 = vmax.f32 %v2527, %v2561
        %v2563 = vrot.slane %v2562, 4
        %v2564 = vmax.f32 %v2562, %v2563
        %v2565 = vrot.slane %v2564, 2
        %v2566 = vmax.f32 %v2564, %v2565
        %v2567 = vrot.slane %v2566, 1
        %v2568 = vmax.f32 %v2566, %v2567
        %v2569 = vsel %vm2441, %v2530, -inf
        %v2570 = vmax.f32 %v2529, %v2569
        %v2571 = vrot.slane %v2570, 4
        %v2572 = vmax.f32 %v2570, %v2571
        %v2573 = vrot.slane %v2572, 2
        %v2574 = vmax.f32 %v2572, %v2573
        %v2575 = vrot.slane %v2574, 1
        %v2576 = vmax.f32 %v2574, %v2575
        %v2577 = vsel %vm2441, %v2532, -inf
        %v2578 = vmax.f32 %v2531, %v2577
        %v2579 = vrot.slane %v2578, 4
        %v2580 = vmax.f32 %v2578, %v2579
        %v2581 = vrot.slane %v2580, 2
        %v2582 = vmax.f32 %v2580, %v2581
        %v2583 = vrot.slane %v2582, 1
        %v2584 = vmax.f32 %v2582, %v2583
        %v2585 = vsel %vm2441, %v2534, -inf
        %v2586 = vmax.f32 %v2533, %v2585
        %v2587 = vrot.slane %v2586, 4
        %v2588 = vmax.f32 %v2586, %v2587
        %v2589 = vrot.slane %v2588, 2
        %v2590 = vmax.f32 %v2588, %v2589
        %v2591 = vrot.slane %v2590, 1
        %v2592 = vmax.f32 %v2590, %v2591
        %v2593 = vsel %vm2441, %v2536, -inf
        %v2594 = vmax.f32 %v2535, %v2593
        %v2595 = vrot.slane %v2594, 4
        %v2596 = vmax.f32 %v2594, %v2595
        %v2597 = vrot.slane %v2596, 2
        %v2598 = vmax.f32 %v2596, %v2597
        %v2599 = vrot.slane %v2598, 1
        %v2600 = vmax.f32 %v2598, %v2599
        %v2609 = vsel %vm999, %v2552, %v2544
        %v2610 = vsel %vm1001, %v2560, %v2609
        %v2611 = vsel %vm1003, %v2568, %v2610
        %v2612 = vsel %vm1005, %v2576, %v2611
        %v2613 = vsel %vm1007, %v2584, %v2612
        %v2614 = vsel %vm1009, %v2592, %v2613
        %v2615 = vsel %vm1011, %v2600, %v2614
        %2617 = vst [vmem:[%s341 + $0x10] sm:$0xff] %v2615
        %s2618 = sand.u32 %s186, 1
        %s2619 = scalar_lea.sflag [#allocation4], %s2618
        %s2620 = sand.u32 %s186, 1
        %s2621 = smul.addr %s2620, 24
        %s2622 = scalar_lea.vmem [#allocation10], %s2621
        // Predicated region
        $region65: #{tpu_custom_call.1} parent=47 // pred_check
          %p2623 = pneg %p196
        $region66: #{tpu_custom_call.1} parent=47 // pred_check_branch
          %2625 = sbr.rel (%p2623) target = $region68
        $region67: #{tpu_custom_call.1} parent=47 // pred_region
          %s2627 = ssub.s32 384, 384
          %2628 = vsyncadd %s2619, %s2627
          %s2629 = smul.addr %s26, 3
          %s2630 = smul.addr %s2629, 128
          %s2631 = scalar_lea.hbm %s7, %s2630
          %s2633 = sshll.u32 %s2622, 4
          %s2634 = int_to_ptr.vmem [resolvable:$true] %s2633
          %2636 = dma.vmem_to_hbm [thread:$0]  %s2634, 384, %s2631, %s2619
        $region68: #{tpu_custom_call.1} parent=47 // pred_fallthru
          _
      $region48: #{tpu_custom_call.1} parent=5 // pred_fallthru
        _
      %p2637 = scmp.le.s32.totalorder 2, %s21
      // Predicated region
      $region69: #{tpu_custom_call.1} parent=5 // pred_check
        %p2638 = pneg %p2637
      $region70: #{tpu_custom_call.1} parent=5 // pred_check_branch
        %2640 = sbr.rel (%p2638) target = $region72
      $region71: #{tpu_custom_call.1} parent=5 // pred_region
        %s2641 = ssub.s32 %s21, 2
        // Predicated region
        $region73: #{tpu_custom_call.1} parent=71 // pred_check
          %p2642 = pneg %p202
        $region74: #{tpu_custom_call.1} parent=71 // pred_check_branch
          %2644 = sbr.rel (%p2642) target = $region76
        $region75: #{tpu_custom_call.1} parent=71 // pred_region
          %s2645 = sand.u32 %s187, 1
          %s2646 = scalar_lea.sflag [#allocation4], %s2645
          %s2647 = sand.u32 %s187, 1
          %s2648 = smul.addr %s2647, 24
          %s2649 = scalar_lea.vmem [#allocation10], %s2648
          %2650 = dma.done %s2646, 384
        $region76: #{tpu_custom_call.1} parent=71 // pred_fallthru
          _
      $region72: #{tpu_custom_call.1} parent=5 // pred_fallthru
        _
    $region6: #{tpu_custom_call.1} parent=1 // loop_footer
      %s25 = sadd.s32 1, %s21
    $region7: #{tpu_custom_call.1} parent=1 // loop_footer_branch
      %20 = sbr.rel target = $region3
    $region8: #{tpu_custom_call.1} parent=1 // loop_exit
      _
    %2651 = vsyncpa [#allocation3], 1
    %s2652 = scalar_lea.sflag [#allocation3], 1
    %2653 = vsyncpa %s2652, 1
    %2654 = vsyncpa [#allocation6], 1
    %2655 = vsyncpa [#allocation9], 1
    %2656 = vsyncpa [#allocation4], 1
    %s2657 = scalar_lea.sflag [#allocation4], 1
    %2658 = vsyncpa %s2657, 1

</llo_original>
